<compile_context>
chip_gen: v6e
topology: v6e:2x2x1
jax: 0.10.0
libtpu: 0.0.40
codegen_flags: <defaults>
</compile_context>

<pallas_src>
import math
import functools
import numpy as np
import jax
import jax.numpy as jnp
from jax.experimental import pallas as pl
from jax.experimental.pallas import tpu as pltpu


# ----------------------------- Pallas kernel --------------------------------
def _encoder_layer_kernel(x_ref,                     # (Bt, S, D)   f32
                          wqkv_ref,                  # (D, 3D)      bf16  [Wq*scale | Wk | Wv]
                          bqkv_ref,                  # (1, 3D)      f32   (scale folded into bq)
                          wo_ref,                    # (D, D)       bf16
                          bo_ref,                    # (1, D)       f32
                          w1_ref, b1_ref,            # (D, F) bf16, (1, F) f32
                          w2_ref, b2_ref,            # (F, D) bf16, (1, D) f32
                          out_ref,                   # (Bt, S, D)   f32
                          *, nhead):
    bt, S, D = x_ref.shape
    H = nhead
    dh = D // H

    x = x_ref[...]                                   # (bt, S, D) f32
    x2d = x.reshape(bt * S, D)
    x_bf = x2d.astype(jnp.bfloat16)

    # ---- dense fused QKV projection: single (Bt*S, D) @ (D, 3D) MXU pass ----
    qkv = jnp.dot(x_bf, wqkv_ref[...],
                  preferred_element_type=jnp.float32) + bqkv_ref[...]   # (bt*S, 3D) f32

    # q / k / v slices land on D-column (lane-aligned at production sizes) boundaries.
    q = qkv[:, 0 * D:1 * D].reshape(bt, S, D).astype(jnp.bfloat16)  # scale already folded in
    k = qkv[:, 1 * D:2 * D].reshape(bt, S, D).astype(jnp.bfloat16)
    v = qkv[:, 2 * D:3 * D].reshape(bt, S, D).astype(jnp.bfloat16)

    # ---- attention: per-head lane slices, leading-batch einsums -------------
    o_heads = []
    for h in range(H):
        lo, hi = h * dh, (h + 1) * dh
        q_h = q[:, :, lo:hi]                          # (bt, S, dh) bf16
        k_h = k[:, :, lo:hi]
        v_h = v[:, :, lo:hi]
        s_h = jnp.einsum('bqd,bkd->bqk', q_h, k_h,
                         preferred_element_type=jnp.float32)            # (bt, S, S) f32
        m_h = jnp.max(s_h, axis=-1, keepdims=True)
        p_h = jnp.exp(s_h - m_h)
        p_h = p_h * pl.reciprocal(jnp.sum(p_h, axis=-1, keepdims=True), approx=True)
        o_h = jnp.einsum('bqk,bkd->bqd', p_h.astype(jnp.bfloat16), v_h,
                         preferred_element_type=jnp.float32)            # (bt, S, dh) f32
        o_heads.append(o_h.astype(jnp.bfloat16))

    # concat heads -> dense output projection (head reduction in the MXU K dim)
    o = jnp.concatenate(o_heads, axis=-1).reshape(bt * S, D)            # (bt*S, D) bf16
    attn = jnp.dot(o, wo_ref[...],
                   preferred_element_type=jnp.float32) + bo_ref[...]    # (bt*S, D) f32

    x1 = x2d + attn                                   # residual 1 (dropout1 identity in eval)

    # ---- feed-forward on the flattened (Bt*S, D) slab ------------------------
    h1 = jnp.dot(x1.astype(jnp.bfloat16), w1_ref[...],
                 preferred_element_type=jnp.float32) + b1_ref[...]
    h1 = jnp.maximum(h1, 0.0)                         # relu (dropout identity)
    ffn = jnp.dot(h1.astype(jnp.bfloat16), w2_ref[...],
                  preferred_element_type=jnp.float32) + b2_ref[...]
    out_ref[...] = (x1 + ffn).reshape(bt, S, D).astype(out_ref.dtype)   # residual 2


# ------------------------- one-time weight preparation -----------------------
def prepare_encoder_layer_params(params, nhead):
    """Hoisted out of the per-call path: run once per layer."""
    D = params["out_proj_w"].shape[0]
    F = params["w1"].shape[0]
    dh = D // nhead
    scale = 1.0 / math.sqrt(dh)

    in_w = params["in_proj_w"]                        # (3D, D) rows = [Wq; Wk; Wv]
    in_b = params["in_proj_b"]                        # (3D,)
    wq = in_w[0 * D:1 * D].T * scale                  # fold 1/sqrt(dh) into Wq / bq
    wk = in_w[1 * D:2 * D].T
    wv = in_w[2 * D:3 * D].T
    bq = in_b[0 * D:1 * D] * scale
    bk = in_b[1 * D:2 * D]
    bv = in_b[2 * D:3 * D]

    return {
        # [ all-Q | all-K | all-V ] packing -> slices at D boundaries in-kernel.
        "wqkv": jnp.concatenate([wq, wk, wv], axis=1).astype(jnp.bfloat16),   # (D, 3D)
        "bqkv": jnp.concatenate([bq, bk, bv]).reshape(1, 3 * D).astype(jnp.float32),
        "wo":   params["out_proj_w"].T.astype(jnp.bfloat16),                  # (D, D)
        "bo":   params["out_proj_b"].reshape(1, D).astype(jnp.float32),
        "w1":   params["w1"].T.astype(jnp.bfloat16),                          # (D, F)
        "b1":   params["b1"].reshape(1, F).astype(jnp.float32),
        "w2":   params["w2"].T.astype(jnp.bfloat16),                          # (F, D)
        "b2":   params["b2"].reshape(1, D).astype(jnp.float32),
    }


def _vmem_limit_bytes():
    """Generation-aware VMEM budget (~75% of physical, leaves compiler headroom)."""
    try:
        cap = pltpu.get_tpu_info().vmem_capacity_bytes
        return int(cap * 3 // 4)
    except Exception:
        return 64 * 1024 * 1024


# ------------------------------- wrapper -------------------------------------
def transformer_encoder_layer(src, prepared, nhead, batch_block=None):
    """src: (S, B, D) float32 — PyTorch nn.MultiheadAttention layout."""
    S, B, D = src.shape

    x_bsd = jnp.transpose(src, (1, 0, 2))             # (B, S, D)  (see TODO above)

    # Batch-block size: target ~512 rows (Bt*S) per grid step so the FFN /
    # projections see a decent M and per-step overhead is amortized, but cap at
    # B//2 so the parallel grid axis has >= 2 steps (v7x dual TensorCore).
    if batch_block is None:
        max_bt = max(1, B // 2)
        target = max(1, 512 // S)
        bt = 1
        for cand in range(1, max_bt + 1):
            if B % cand == 0 and cand <= target:
                bt = cand
    else:
        bt = batch_block
    assert B % bt == 0, "batch_block must divide B"
    grid = (B // bt,)

    weights = (prepared["wqkv"], prepared["bqkv"], prepared["wo"], prepared["bo"],
               prepared["w1"], prepared["b1"], prepared["w2"], prepared["b2"])
    kernel = functools.partial(_encoder_layer_kernel, nhead=nhead)
    vmem_limit = _vmem_limit_bytes()

    def call(single_buffer_weights):
        def const_spec(a):
            # Constant-index blocks: fetched once across the grid; single-buffer
            # them so weight VMEM is not doubled by the default pipeline.
            if single_buffer_weights:
                return pl.BlockSpec(a.shape, lambda *_: (0,) * a.ndim,
                                    pipeline_mode=pl.Buffered(1))
            return pl.BlockSpec(a.shape, lambda *_: (0,) * a.ndim)

        return pl.pallas_call(
            kernel,
            out_shape=jax.ShapeDtypeStruct((B, S, D), jnp.float32),
            grid=grid,
            in_specs=[pl.BlockSpec((bt, S, D), lambda i: (i, 0, 0))]
                     + [const_spec(w) for w in weights],
            out_specs=pl.BlockSpec((bt, S, D), lambda i: (i, 0, 0)),
            compiler_params=pltpu.CompilerParams(
                dimension_semantics=("parallel",),
                vmem_limit_bytes=vmem_limit,
            ),
        )(x_bsd, *weights)

    try:
        out = jax.block_until_ready(call(True))
    except Exception:
        # Fallback if this JAX build rejects pipeline_mode / Buffered(1).
        out = jax.block_until_ready(call(False))

    return jnp.transpose(out, (1, 0, 2))              # back to (S, B, D)


# ----------------------- pure-JAX reference (for check) ----------------------
def _reference(src, params, nhead):
    S, B, D = src.shape
    dh = D // nhead
    wq = params["in_proj_w"][0 * D:1 * D]
    wk = params["in_proj_w"][1 * D:2 * D]
    wv = params["in_proj_w"][2 * D:3 * D]
    bq, bk, bv = (params["in_proj_b"][i * D:(i + 1) * D] for i in range(3))

    x = jnp.transpose(src, (1, 0, 2))                 # (B, S, D)
    q = x @ wq.T + bq
    k = x @ wk.T + bk
    v = x @ wv.T + bv
    q = q.reshape(B, S, nhead, dh).transpose(0, 2, 1, 3) / math.sqrt(dh)
    k = k.reshape(B, S, nhead, dh).transpose(0, 2, 1, 3)
    v = v.reshape(B, S, nhead, dh).transpose(0, 2, 1, 3)
    s = jnp.einsum("bhqd,bhkd->bhqk", q, k)
    p = jax.nn.softmax(s, axis=-1)
    a = jnp.einsum("bhqk,bhkd->bhqd", p, v)
    a = a.transpose(0, 2, 1, 3).reshape(B, S, D)
    a = a @ params["out_proj_w"].T + params["out_proj_b"]
    x1 = x + a
    h1 = jax.nn.relu(x1 @ params["w1"].T + params["b1"])
    x2 = x1 + (h1 @ params["w2"].T + params["b2"])
    return jnp.transpose(x2, (1, 0, 2))


# --------------------------------- main --------------------------------------
if __name__ == "__main__":
    S, B, D, H, FF = 8, 2, 32, 4, 64   # seq, batch, d_model, nhead, dim_feedforward

    key = jax.random.PRNGKey(0)
    ks = jax.random.split(key, 9)
    params = {
        "in_proj_w":  jax.random.normal(ks[0], (3 * D, D), jnp.float32) * 0.05,
        "in_proj_b":  jax.random.normal(ks[1], (3 * D,),   jnp.float32) * 0.05,
        "out_proj_w": jax.random.normal(ks[2], (D, D),     jnp.float32) * 0.05,
        "out_proj_b": jax.random.normal(ks[3], (D,),       jnp.float32) * 0.05,
        "w1":         jax.random.normal(ks[4], (FF, D),    jnp.float32) * 0.05,
        "b1":         jax.random.normal(ks[5], (FF,),      jnp.float32) * 0.05,
        "w2":         jax.random.normal(ks[6], (D, FF),    jnp.float32) * 0.05,
        "b2":         jax.random.normal(ks[7], (D,),       jnp.float32) * 0.05,
    }
    src = jax.random.normal(ks[8], (S, B, D), jnp.float32)

    prepared = prepare_encoder_layer_params(params, nhead=H)   # once per layer
    out = transformer_encoder_layer(src, prepared, nhead=H)
    out = jax.block_until_ready(out)

    ref = _reference(src, params, nhead=H)
    # bf16 MXU inputs (f32 accumulation) -> looser tolerance than pure f32.
    np.testing.assert_allclose(np.asarray(out), np.asarray(ref), rtol=2e-2, atol=2e-2)

    print("KERNEL_OK")
</pallas_src>

<mosaic_0001>
module attributes {stable_mosaic.version = 11 : i64} {
  func.func @_encoder_layer_kernel(%arg0: i32, %arg1: memref<1x8x32xf32, #tpu.memory_space<vmem>>, %arg2: memref<32x96xbf16, #tpu.memory_space<vmem>>, %arg3: memref<1x96xf32, #tpu.memory_space<vmem>>, %arg4: memref<32x32xbf16, #tpu.memory_space<vmem>>, %arg5: memref<1x32xf32, #tpu.memory_space<vmem>>, %arg6: memref<32x64xbf16, #tpu.memory_space<vmem>>, %arg7: memref<1x64xf32, #tpu.memory_space<vmem>>, %arg8: memref<64x32xbf16, #tpu.memory_space<vmem>>, %arg9: memref<1x32xf32, #tpu.memory_space<vmem>>, %arg10: memref<1x8x32xf32, #tpu.memory_space<vmem>>) attributes {dimension_semantics = [#tpu.dimension_semantics<parallel>], iteration_bounds = array<i64: 2>, scalar_prefetch = 0 : i64, scratch_operands = 0 : i64, tpu.core_type = #tpu.core_type<tc>, window_params = [{transform_indices = @transform_0, window_bounds = array<i64: 1, 8, 32>}, {pipeline_mode = #tpu.pipeline_mode<synchronous>, transform_indices = @transform_1, window_bounds = array<i64: 32, 96>}, {pipeline_mode = #tpu.pipeline_mode<synchronous>, transform_indices = @transform_2, window_bounds = array<i64: 1, 96>}, {pipeline_mode = #tpu.pipeline_mode<synchronous>, transform_indices = @transform_3, window_bounds = array<i64: 32, 32>}, {pipeline_mode = #tpu.pipeline_mode<synchronous>, transform_indices = @transform_4, window_bounds = array<i64: 1, 32>}, {pipeline_mode = #tpu.pipeline_mode<synchronous>, transform_indices = @transform_5, window_bounds = array<i64: 32, 64>}, {pipeline_mode = #tpu.pipeline_mode<synchronous>, transform_indices = @transform_6, window_bounds = array<i64: 1, 64>}, {pipeline_mode = #tpu.pipeline_mode<synchronous>, transform_indices = @transform_7, window_bounds = array<i64: 64, 32>}, {pipeline_mode = #tpu.pipeline_mode<synchronous>, transform_indices = @transform_8, window_bounds = array<i64: 1, 32>}, {transform_indices = @transform_9, window_bounds = array<i64: 1, 8, 32>}]} {
    %c0 = arith.constant 0 : index
    %c0_0 = arith.constant 0 : index
    %c0_1 = arith.constant 0 : index
    %0 = vector.load %arg1[%c0, %c0_0, %c0_1] : memref<1x8x32xf32, #tpu.memory_space<vmem>>, vector<1x8x32xf32>
    %1 = vector.shape_cast %0 : vector<1x8x32xf32> to vector<8x32xf32>
    %2 = arith.truncf %1 : vector<8x32xf32> to vector<8x32xbf16>
    %c0_2 = arith.constant 0 : index
    %c0_3 = arith.constant 0 : index
    %3 = vector.load %arg2[%c0_2, %c0_3] : memref<32x96xbf16, #tpu.memory_space<vmem>>, vector<32x96xbf16>
    %cst = arith.constant dense<0.000000e+00> : vector<8x96xf32>
    %4 = tpu.matmul %2, %3, %cst {dimension_numbers = #tpu.dot_dimension_numbers<[1], [0], [0], [1], [0, 0, 1, 1], [], []>} : vector<8x32xbf16>, vector<32x96xbf16>, vector<8x96xf32> -> vector<8x96xf32>
    %c0_4 = arith.constant 0 : index
    %c0_5 = arith.constant 0 : index
    %5 = vector.load %arg3[%c0_4, %c0_5] : memref<1x96xf32, #tpu.memory_space<vmem>>, vector<1x96xf32>
    %6 = vector.broadcast %5 : vector<1x96xf32> to vector<8x96xf32>
    %7 = arith.addf %4, %6 : vector<8x96xf32>
    %8 = vector.extract_strided_slice %7 {offsets = [0, 0], sizes = [8, 32], strides = [1, 1]} : vector<8x96xf32> to vector<8x32xf32>
    %9 = vector.shape_cast %8 : vector<8x32xf32> to vector<1x8x32xf32>
    %10 = arith.truncf %9 : vector<1x8x32xf32> to vector<1x8x32xbf16>
    %11 = vector.extract_strided_slice %7 {offsets = [0, 32], sizes = [8, 32], strides = [1, 1]} : vector<8x96xf32> to vector<8x32xf32>
    %12 = vector.shape_cast %11 : vector<8x32xf32> to vector<1x8x32xf32>
    %13 = arith.truncf %12 : vector<1x8x32xf32> to vector<1x8x32xbf16>
    %14 = vector.extract_strided_slice %7 {offsets = [0, 64], sizes = [8, 32], strides = [1, 1]} : vector<8x96xf32> to vector<8x32xf32>
    %15 = vector.shape_cast %14 : vector<8x32xf32> to vector<1x8x32xf32>
    %16 = arith.truncf %15 : vector<1x8x32xf32> to vector<1x8x32xbf16>
    %17 = vector.extract_strided_slice %10 {offsets = [0, 0, 0], sizes = [1, 8, 8], strides = [1, 1, 1]} : vector<1x8x32xbf16> to vector<1x8x8xbf16>
    %18 = vector.extract_strided_slice %13 {offsets = [0, 0, 0], sizes = [1, 8, 8], strides = [1, 1, 1]} : vector<1x8x32xbf16> to vector<1x8x8xbf16>
    %19 = vector.extract_strided_slice %16 {offsets = [0, 0, 0], sizes = [1, 8, 8], strides = [1, 1, 1]} : vector<1x8x32xbf16> to vector<1x8x8xbf16>
    "tpu.trace_start"() <{level = 10 : i32, message = "bqd,bkd->bqk"}> : () -> ()
    %cst_6 = arith.constant dense<0.000000e+00> : vector<1x8x8xf32>
    %20 = tpu.matmul %17, %18, %cst_6 {dimension_numbers = #tpu.dot_dimension_numbers<[2], [2], [1], [1], [0, 0, 0, 1, 1, 1], [0], [0]>} : vector<1x8x8xbf16>, vector<1x8x8xbf16>, vector<1x8x8xf32> -> vector<1x8x8xf32>
    "tpu.trace_stop"() : () -> ()
    %cst_7 = arith.constant dense<0xFF800000> : vector<1x8xf32>
    %21 = vector.multi_reduction <maximumf>, %20, %cst_7 [2] : vector<1x8x8xf32> to vector<1x8xf32>
    %22 = vector.shape_cast %21 : vector<1x8xf32> to vector<1x8x1xf32>
    %23 = vector.broadcast %22 : vector<1x8x1xf32> to vector<1x8x8xf32>
    %24 = arith.subf %20, %23 : vector<1x8x8xf32>
    %25 = math.exp %24 : vector<1x8x8xf32>
    %cst_8 = arith.constant dense<0.000000e+00> : vector<1x8xf32>
    %26 = vector.multi_reduction <add>, %25, %cst_8 [2] : vector<1x8x8xf32> to vector<1x8xf32>
    %27 = vector.shape_cast %26 : vector<1x8xf32> to vector<1x8x1xf32>
    %28 = tpu.reciprocal %27 {approx = true} : vector<1x8x1xf32> -> vector<1x8x1xf32>
    %29 = vector.broadcast %28 : vector<1x8x1xf32> to vector<1x8x8xf32>
    %30 = arith.mulf %25, %29 : vector<1x8x8xf32>
    %31 = arith.truncf %30 : vector<1x8x8xf32> to vector<1x8x8xbf16>
    "tpu.trace_start"() <{level = 10 : i32, message = "bqk,bkd->bqd"}> : () -> ()
    %cst_9 = arith.constant dense<0.000000e+00> : vector<1x8x8xf32>
    %32 = tpu.matmul %31, %19, %cst_9 {dimension_numbers = #tpu.dot_dimension_numbers<[2], [1], [1], [2], [0, 0, 0, 1, 1, 2], [0], [0]>} : vector<1x8x8xbf16>, vector<1x8x8xbf16>, vector<1x8x8xf32> -> vector<1x8x8xf32>
    "tpu.trace_stop"() : () -> ()
    %33 = arith.truncf %32 : vector<1x8x8xf32> to vector<1x8x8xbf16>
    %34 = vector.extract_strided_slice %10 {offsets = [0, 0, 8], sizes = [1, 8, 8], strides = [1, 1, 1]} : vector<1x8x32xbf16> to vector<1x8x8xbf16>
    %35 = vector.extract_strided_slice %13 {offsets = [0, 0, 8], sizes = [1, 8, 8], strides = [1, 1, 1]} : vector<1x8x32xbf16> to vector<1x8x8xbf16>
    %36 = vector.extract_strided_slice %16 {offsets = [0, 0, 8], sizes = [1, 8, 8], strides = [1, 1, 1]} : vector<1x8x32xbf16> to vector<1x8x8xbf16>
    "tpu.trace_start"() <{level = 10 : i32, message = "bqd,bkd->bqk"}> : () -> ()
    %cst_10 = arith.constant dense<0.000000e+00> : vector<1x8x8xf32>
    %37 = tpu.matmul %34, %35, %cst_10 {dimension_numbers = #tpu.dot_dimension_numbers<[2], [2], [1], [1], [0, 0, 0, 1, 1, 1], [0], [0]>} : vector<1x8x8xbf16>, vector<1x8x8xbf16>, vector<1x8x8xf32> -> vector<1x8x8xf32>
    "tpu.trace_stop"() : () -> ()
    %cst_11 = arith.constant dense<0xFF800000> : vector<1x8xf32>
    %38 = vector.multi_reduction <maximumf>, %37, %cst_11 [2] : vector<1x8x8xf32> to vector<1x8xf32>
    %39 = vector.shape_cast %38 : vector<1x8xf32> to vector<1x8x1xf32>
    %40 = vector.broadcast %39 : vector<1x8x1xf32> to vector<1x8x8xf32>
    %41 = arith.subf %37, %40 : vector<1x8x8xf32>
    %42 = math.exp %41 : vector<1x8x8xf32>
    %cst_12 = arith.constant dense<0.000000e+00> : vector<1x8xf32>
    %43 = vector.multi_reduction <add>, %42, %cst_12 [2] : vector<1x8x8xf32> to vector<1x8xf32>
    %44 = vector.shape_cast %43 : vector<1x8xf32> to vector<1x8x1xf32>
    %45 = tpu.reciprocal %44 {approx = true} : vector<1x8x1xf32> -> vector<1x8x1xf32>
    %46 = vector.broadcast %45 : vector<1x8x1xf32> to vector<1x8x8xf32>
    %47 = arith.mulf %42, %46 : vector<1x8x8xf32>
    %48 = arith.truncf %47 : vector<1x8x8xf32> to vector<1x8x8xbf16>
    "tpu.trace_start"() <{level = 10 : i32, message = "bqk,bkd->bqd"}> : () -> ()
    %cst_13 = arith.constant dense<0.000000e+00> : vector<1x8x8xf32>
    %49 = tpu.matmul %48, %36, %cst_13 {dimension_numbers = #tpu.dot_dimension_numbers<[2], [1], [1], [2], [0, 0, 0, 1, 1, 2], [0], [0]>} : vector<1x8x8xbf16>, vector<1x8x8xbf16>, vector<1x8x8xf32> -> vector<1x8x8xf32>
    "tpu.trace_stop"() : () -> ()
    %50 = arith.truncf %49 : vector<1x8x8xf32> to vector<1x8x8xbf16>
    %51 = vector.extract_strided_slice %10 {offsets = [0, 0, 16], sizes = [1, 8, 8], strides = [1, 1, 1]} : vector<1x8x32xbf16> to vector<1x8x8xbf16>
    %52 = vector.extract_strided_slice %13 {offsets = [0, 0, 16], sizes = [1, 8, 8], strides = [1, 1, 1]} : vector<1x8x32xbf16> to vector<1x8x8xbf16>
    %53 = vector.extract_strided_slice %16 {offsets = [0, 0, 16], sizes = [1, 8, 8], strides = [1, 1, 1]} : vector<1x8x32xbf16> to vector<1x8x8xbf16>
    "tpu.trace_start"() <{level = 10 : i32, message = "bqd,bkd->bqk"}> : () -> ()
    %cst_14 = arith.constant dense<0.000000e+00> : vector<1x8x8xf32>
    %54 = tpu.matmul %51, %52, %cst_14 {dimension_numbers = #tpu.dot_dimension_numbers<[2], [2], [1], [1], [0, 0, 0, 1, 1, 1], [0], [0]>} : vector<1x8x8xbf16>, vector<1x8x8xbf16>, vector<1x8x8xf32> -> vector<1x8x8xf32>
    "tpu.trace_stop"() : () -> ()
    %cst_15 = arith.constant dense<0xFF800000> : vector<1x8xf32>
    %55 = vector.multi_reduction <maximumf>, %54, %cst_15 [2] : vector<1x8x8xf32> to vector<1x8xf32>
    %56 = vector.shape_cast %55 : vector<1x8xf32> to vector<1x8x1xf32>
    %57 = vector.broadcast %56 : vector<1x8x1xf32> to vector<1x8x8xf32>
    %58 = arith.subf %54, %57 : vector<1x8x8xf32>
    %59 = math.exp %58 : vector<1x8x8xf32>
    %cst_16 = arith.constant dense<0.000000e+00> : vector<1x8xf32>
    %60 = vector.multi_reduction <add>, %59, %cst_16 [2] : vector<1x8x8xf32> to vector<1x8xf32>
    %61 = vector.shape_cast %60 : vector<1x8xf32> to vector<1x8x1xf32>
    %62 = tpu.reciprocal %61 {approx = true} : vector<1x8x1xf32> -> vector<1x8x1xf32>
    %63 = vector.broadcast %62 : vector<1x8x1xf32> to vector<1x8x8xf32>
    %64 = arith.mulf %59, %63 : vector<1x8x8xf32>
    %65 = arith.truncf %64 : vector<1x8x8xf32> to vector<1x8x8xbf16>
    "tpu.trace_start"() <{level = 10 : i32, message = "bqk,bkd->bqd"}> : () -> ()
    %cst_17 = arith.constant dense<0.000000e+00> : vector<1x8x8xf32>
    %66 = tpu.matmul %65, %53, %cst_17 {dimension_numbers = #tpu.dot_dimension_numbers<[2], [1], [1], [2], [0, 0, 0, 1, 1, 2], [0], [0]>} : vector<1x8x8xbf16>, vector<1x8x8xbf16>, vector<1x8x8xf32> -> vector<1x8x8xf32>
    "tpu.trace_stop"() : () -> ()
    %67 = arith.truncf %66 : vector<1x8x8xf32> to vector<1x8x8xbf16>
    %68 = vector.extract_strided_slice %10 {offsets = [0, 0, 24], sizes = [1, 8, 8], strides = [1, 1, 1]} : vector<1x8x32xbf16> to vector<1x8x8xbf16>
    %69 = vector.extract_strided_slice %13 {offsets = [0, 0, 24], sizes = [1, 8, 8], strides = [1, 1, 1]} : vector<1x8x32xbf16> to vector<1x8x8xbf16>
    %70 = vector.extract_strided_slice %16 {offsets = [0, 0, 24], sizes = [1, 8, 8], strides = [1, 1, 1]} : vector<1x8x32xbf16> to vector<1x8x8xbf16>
    "tpu.trace_start"() <{level = 10 : i32, message = "bqd,bkd->bqk"}> : () -> ()
    %cst_18 = arith.constant dense<0.000000e+00> : vector<1x8x8xf32>
    %71 = tpu.matmul %68, %69, %cst_18 {dimension_numbers = #tpu.dot_dimension_numbers<[2], [2], [1], [1], [0, 0, 0, 1, 1, 1], [0], [0]>} : vector<1x8x8xbf16>, vector<1x8x8xbf16>, vector<1x8x8xf32> -> vector<1x8x8xf32>
    "tpu.trace_stop"() : () -> ()
    %cst_19 = arith.constant dense<0xFF800000> : vector<1x8xf32>
    %72 = vector.multi_reduction <maximumf>, %71, %cst_19 [2] : vector<1x8x8xf32> to vector<1x8xf32>
    %73 = vector.shape_cast %72 : vector<1x8xf32> to vector<1x8x1xf32>
    %74 = vector.broadcast %73 : vector<1x8x1xf32> to vector<1x8x8xf32>
    %75 = arith.subf %71, %74 : vector<1x8x8xf32>
    %76 = math.exp %75 : vector<1x8x8xf32>
    %cst_20 = arith.constant dense<0.000000e+00> : vector<1x8xf32>
    %77 = vector.multi_reduction <add>, %76, %cst_20 [2] : vector<1x8x8xf32> to vector<1x8xf32>
    %78 = vector.shape_cast %77 : vector<1x8xf32> to vector<1x8x1xf32>
    %79 = tpu.reciprocal %78 {approx = true} : vector<1x8x1xf32> -> vector<1x8x1xf32>
    %80 = vector.broadcast %79 : vector<1x8x1xf32> to vector<1x8x8xf32>
    %81 = arith.mulf %76, %80 : vector<1x8x8xf32>
    %82 = arith.truncf %81 : vector<1x8x8xf32> to vector<1x8x8xbf16>
    "tpu.trace_start"() <{level = 10 : i32, message = "bqk,bkd->bqd"}> : () -> ()
    %cst_21 = arith.constant dense<0.000000e+00> : vector<1x8x8xf32>
    %83 = tpu.matmul %82, %70, %cst_21 {dimension_numbers = #tpu.dot_dimension_numbers<[2], [1], [1], [2], [0, 0, 0, 1, 1, 2], [0], [0]>} : vector<1x8x8xbf16>, vector<1x8x8xbf16>, vector<1x8x8xf32> -> vector<1x8x8xf32>
    "tpu.trace_stop"() : () -> ()
    %84 = arith.truncf %83 : vector<1x8x8xf32> to vector<1x8x8xbf16>
    %85 = tpu.concatenate %33, %50, %67, %84 in 2 : vector<1x8x8xbf16>, vector<1x8x8xbf16>, vector<1x8x8xbf16>, vector<1x8x8xbf16> -> vector<1x8x32xbf16>
    %86 = vector.shape_cast %85 : vector<1x8x32xbf16> to vector<8x32xbf16>
    %c0_22 = arith.constant 0 : index
    %c0_23 = arith.constant 0 : index
    %87 = vector.load %arg4[%c0_22, %c0_23] : memref<32x32xbf16, #tpu.memory_space<vmem>>, vector<32x32xbf16>
    %cst_24 = arith.constant dense<0.000000e+00> : vector<8x32xf32>
    %88 = tpu.matmul %86, %87, %cst_24 {dimension_numbers = #tpu.dot_dimension_numbers<[1], [0], [0], [1], [0, 0, 1, 1], [], []>} : vector<8x32xbf16>, vector<32x32xbf16>, vector<8x32xf32> -> vector<8x32xf32>
    %c0_25 = arith.constant 0 : index
    %c0_26 = arith.constant 0 : index
    %89 = vector.load %arg5[%c0_25, %c0_26] : memref<1x32xf32, #tpu.memory_space<vmem>>, vector<1x32xf32>
    %90 = vector.broadcast %89 : vector<1x32xf32> to vector<8x32xf32>
    %91 = arith.addf %88, %90 : vector<8x32xf32>
    %92 = arith.addf %1, %91 : vector<8x32xf32>
    %93 = arith.truncf %92 : vector<8x32xf32> to vector<8x32xbf16>
    %c0_27 = arith.constant 0 : index
    %c0_28 = arith.constant 0 : index
    %94 = vector.load %arg6[%c0_27, %c0_28] : memref<32x64xbf16, #tpu.memory_space<vmem>>, vector<32x64xbf16>
    %cst_29 = arith.constant dense<0.000000e+00> : vector<8x64xf32>
    %95 = tpu.matmul %93, %94, %cst_29 {dimension_numbers = #tpu.dot_dimension_numbers<[1], [0], [0], [1], [0, 0, 1, 1], [], []>} : vector<8x32xbf16>, vector<32x64xbf16>, vector<8x64xf32> -> vector<8x64xf32>
    %c0_30 = arith.constant 0 : index
    %c0_31 = arith.constant 0 : index
    %96 = vector.load %arg7[%c0_30, %c0_31] : memref<1x64xf32, #tpu.memory_space<vmem>>, vector<1x64xf32>
    %97 = vector.broadcast %96 : vector<1x64xf32> to vector<8x64xf32>
    %98 = arith.addf %95, %97 : vector<8x64xf32>
    %cst_32 = arith.constant 0.000000e+00 : f32
    %99 = vector.broadcast %cst_32 : f32 to vector<8x64xf32>
    %100 = arith.maximumf %98, %99 : vector<8x64xf32>
    %101 = arith.truncf %100 : vector<8x64xf32> to vector<8x64xbf16>
    %c0_33 = arith.constant 0 : index
    %c0_34 = arith.constant 0 : index
    %102 = vector.load %arg8[%c0_33, %c0_34] : memref<64x32xbf16, #tpu.memory_space<vmem>>, vector<64x32xbf16>
    %cst_35 = arith.constant dense<0.000000e+00> : vector<8x32xf32>
    %103 = tpu.matmul %101, %102, %cst_35 {dimension_numbers = #tpu.dot_dimension_numbers<[1], [0], [0], [1], [0, 0, 1, 1], [], []>} : vector<8x64xbf16>, vector<64x32xbf16>, vector<8x32xf32> -> vector<8x32xf32>
    %c0_36 = arith.constant 0 : index
    %c0_37 = arith.constant 0 : index
    %104 = vector.load %arg9[%c0_36, %c0_37] : memref<1x32xf32, #tpu.memory_space<vmem>>, vector<1x32xf32>
    %105 = vector.broadcast %104 : vector<1x32xf32> to vector<8x32xf32>
    %106 = arith.addf %103, %105 : vector<8x32xf32>
    %107 = arith.addf %92, %106 : vector<8x32xf32>
    %108 = vector.shape_cast %107 : vector<8x32xf32> to vector<1x8x32xf32>
    %c0_38 = arith.constant 0 : index
    %c0_39 = arith.constant 0 : index
    %c0_40 = arith.constant 0 : index
    %109 = vector.load %arg10[%c0_38, %c0_39, %c0_40] : memref<1x8x32xf32, #tpu.memory_space<vmem>>, vector<1x8x32xf32>
    tpu.vector_store %arg10[%c0_38, %c0_39, %c0_40], %108 {strides = array<i32>} : memref<1x8x32xf32, #tpu.memory_space<vmem>>, vector<1x8x32xf32>,
    return
  }
  func.func @transform_0(%arg0: i32) -> (i32, i32, i32) {
    %c0_i32 = arith.constant 0 : i32
    %c0_i32_0 = arith.constant 0 : i32
    %c0_i32_1 = arith.constant 0 : i32
    return %arg0, %c0_i32, %c0_i32_0 : i32, i32, i32
  }
  func.func @transform_1(%arg0: i32) -> (i32, i32) {
    %c0_i32 = arith.constant 0 : i32
    %c0_i32_0 = arith.constant 0 : i32
    %c0_i32_1 = arith.constant 0 : i32
    return %c0_i32, %c0_i32_0 : i32, i32
  }
  func.func @transform_2(%arg0: i32) -> (i32, i32) {
    %c0_i32 = arith.constant 0 : i32
    %c0_i32_0 = arith.constant 0 : i32
    %c0_i32_1 = arith.constant 0 : i32
    return %c0_i32, %c0_i32_0 : i32, i32
  }
  func.func @transform_3(%arg0: i32) -> (i32, i32) {
    %c0_i32 = arith.constant 0 : i32
    %c0_i32_0 = arith.constant 0 : i32
    %c0_i32_1 = arith.constant 0 : i32
    return %c0_i32, %c0_i32_0 : i32, i32
  }
  func.func @transform_4(%arg0: i32) -> (i32, i32) {
    %c0_i32 = arith.constant 0 : i32
    %c0_i32_0 = arith.constant 0 : i32
    %c0_i32_1 = arith.constant 0 : i32
    return %c0_i32, %c0_i32_0 : i32, i32
  }
  func.func @transform_5(%arg0: i32) -> (i32, i32) {
    %c0_i32 = arith.constant 0 : i32
    %c0_i32_0 = arith.constant 0 : i32
    %c0_i32_1 = arith.constant 0 : i32
    return %c0_i32, %c0_i32_0 : i32, i32
  }
  func.func @transform_6(%arg0: i32) -> (i32, i32) {
    %c0_i32 = arith.constant 0 : i32
    %c0_i32_0 = arith.constant 0 : i32
    %c0_i32_1 = arith.constant 0 : i32
    return %c0_i32, %c0_i32_0 : i32, i32
  }
  func.func @transform_7(%arg0: i32) -> (i32, i32) {
    %c0_i32 = arith.constant 0 : i32
    %c0_i32_0 = arith.constant 0 : i32
    %c0_i32_1 = arith.constant 0 : i32
    return %c0_i32, %c0_i32_0 : i32, i32
  }
  func.func @transform_8(%arg0: i32) -> (i32, i32) {
    %c0_i32 = arith.constant 0 : i32
    %c0_i32_0 = arith.constant 0 : i32
    %c0_i32_1 = arith.constant 0 : i32
    return %c0_i32, %c0_i32_0 : i32, i32
  }
  func.func @transform_9(%arg0: i32) -> (i32, i32, i32) {
    %c0_i32 = arith.constant 0 : i32
    %c0_i32_0 = arith.constant 0 : i32
    %c0_i32_1 = arith.constant 0 : i32
    return %arg0, %c0_i32, %c0_i32_0 : i32, i32, i32
  }
}

module attributes {stable_mosaic.version = 11 : i64} {
  func.func @_encoder_layer_kernel(%arg0: i32, %arg1: memref<1x8x32xf32, #tpu.memory_space<vmem>>, %arg2: memref<32x96xbf16, #tpu.memory_space<vmem>>, %arg3: memref<1x96xf32, #tpu.memory_space<vmem>>, %arg4: memref<32x32xbf16, #tpu.memory_space<vmem>>, %arg5: memref<1x32xf32, #tpu.memory_space<vmem>>, %arg6: memref<32x64xbf16, #tpu.memory_space<vmem>>, %arg7: memref<1x64xf32, #tpu.memory_space<vmem>>, %arg8: memref<64x32xbf16, #tpu.memory_space<vmem>>, %arg9: memref<1x32xf32, #tpu.memory_space<vmem>>, %arg10: memref<1x8x32xf32, #tpu.memory_space<vmem>>) attributes {dimension_semantics = [#tpu.dimension_semantics<parallel>], iteration_bounds = array<i64: 2>, scalar_prefetch = 0 : i64, scratch_operands = 0 : i64, tpu.core_type = #tpu.core_type<tc>, window_params = [{transform_indices = @transform_0, window_bounds = array<i64: 1, 8, 32>}, {pipeline_mode = #tpu.pipeline_mode<synchronous>, transform_indices = @transform_1, window_bounds = array<i64: 32, 96>}, {pipeline_mode = #tpu.pipeline_mode<synchronous>, transform_indices = @transform_2, window_bounds = array<i64: 1, 96>}, {pipeline_mode = #tpu.pipeline_mode<synchronous>, transform_indices = @transform_3, window_bounds = array<i64: 32, 32>}, {pipeline_mode = #tpu.pipeline_mode<synchronous>, transform_indices = @transform_4, window_bounds = array<i64: 1, 32>}, {pipeline_mode = #tpu.pipeline_mode<synchronous>, transform_indices = @transform_5, window_bounds = array<i64: 32, 64>}, {pipeline_mode = #tpu.pipeline_mode<synchronous>, transform_indices = @transform_6, window_bounds = array<i64: 1, 64>}, {pipeline_mode = #tpu.pipeline_mode<synchronous>, transform_indices = @transform_7, window_bounds = array<i64: 64, 32>}, {pipeline_mode = #tpu.pipeline_mode<synchronous>, transform_indices = @transform_8, window_bounds = array<i64: 1, 32>}, {transform_indices = @transform_9, window_bounds = array<i64: 1, 8, 32>}]} {
    %c0 = arith.constant 0 : index
    %c0_0 = arith.constant 0 : index
    %c0_1 = arith.constant 0 : index
    %0 = vector.load %arg1[%c0, %c0_0, %c0_1] : memref<1x8x32xf32, #tpu.memory_space<vmem>>, vector<1x8x32xf32>
    %1 = vector.shape_cast %0 : vector<1x8x32xf32> to vector<8x32xf32>
    %2 = arith.truncf %1 : vector<8x32xf32> to vector<8x32xbf16>
    %c0_2 = arith.constant 0 : index
    %c0_3 = arith.constant 0 : index
    %3 = vector.load %arg2[%c0_2, %c0_3] : memref<32x96xbf16, #tpu.memory_space<vmem>>, vector<32x96xbf16>
    %cst = arith.constant dense<0.000000e+00> : vector<8x96xf32>
    %4 = tpu.matmul %2, %3, %cst {dimension_numbers = #tpu.dot_dimension_numbers<[1], [0], [0], [1], [0, 0, 1, 1], [], []>} : vector<8x32xbf16>, vector<32x96xbf16>, vector<8x96xf32> -> vector<8x96xf32>
    %c0_4 = arith.constant 0 : index
    %c0_5 = arith.constant 0 : index
    %5 = vector.load %arg3[%c0_4, %c0_5] : memref<1x96xf32, #tpu.memory_space<vmem>>, vector<1x96xf32>
    %6 = vector.broadcast %5 : vector<1x96xf32> to vector<8x96xf32>
    %7 = arith.addf %4, %6 : vector<8x96xf32>
    %8 = vector.extract_strided_slice %7 {offsets = [0, 0], sizes = [8, 32], strides = [1, 1]} : vector<8x96xf32> to vector<8x32xf32>
    %9 = vector.shape_cast %8 : vector<8x32xf32> to vector<1x8x32xf32>
    %10 = arith.truncf %9 : vector<1x8x32xf32> to vector<1x8x32xbf16>
    %11 = vector.extract_strided_slice %7 {offsets = [0, 32], sizes = [8, 32], strides = [1, 1]} : vector<8x96xf32> to vector<8x32xf32>
    %12 = vector.shape_cast %11 : vector<8x32xf32> to vector<1x8x32xf32>
    %13 = arith.truncf %12 : vector<1x8x32xf32> to vector<1x8x32xbf16>
    %14 = vector.extract_strided_slice %7 {offsets = [0, 64], sizes = [8, 32], strides = [1, 1]} : vector<8x96xf32> to vector<8x32xf32>
    %15 = vector.shape_cast %14 : vector<8x32xf32> to vector<1x8x32xf32>
    %16 = arith.truncf %15 : vector<1x8x32xf32> to vector<1x8x32xbf16>
    %17 = vector.extract_strided_slice %10 {offsets = [0, 0, 0], sizes = [1, 8, 8], strides = [1, 1, 1]} : vector<1x8x32xbf16> to vector<1x8x8xbf16>
    %18 = vector.extract_strided_slice %13 {offsets = [0, 0, 0], sizes = [1, 8, 8], strides = [1, 1, 1]} : vector<1x8x32xbf16> to vector<1x8x8xbf16>
    %19 = vector.extract_strided_slice %16 {offsets = [0, 0, 0], sizes = [1, 8, 8], strides = [1, 1, 1]} : vector<1x8x32xbf16> to vector<1x8x8xbf16>
    "tpu.trace_start"() <{level = 10 : i32, message = "bqd,bkd->bqk"}> : () -> ()
    %cst_6 = arith.constant dense<0.000000e+00> : vector<1x8x8xf32>
    %20 = tpu.matmul %17, %18, %cst_6 {dimension_numbers = #tpu.dot_dimension_numbers<[2], [2], [1], [1], [0, 0, 0, 1, 1, 1], [0], [0]>} : vector<1x8x8xbf16>, vector<1x8x8xbf16>, vector<1x8x8xf32> -> vector<1x8x8xf32>
    "tpu.trace_stop"() : () -> ()
    %cst_7 = arith.constant dense<0xFF800000> : vector<1x8xf32>
    %21 = vector.multi_reduction <maximumf>, %20, %cst_7 [2] : vector<1x8x8xf32> to vector<1x8xf32>
    %22 = vector.shape_cast %21 : vector<1x8xf32> to vector<1x8x1xf32>
    %23 = vector.broadcast %22 : vector<1x8x1xf32> to vector<1x8x8xf32>
    %24 = arith.subf %20, %23 : vector<1x8x8xf32>
    %25 = math.exp %24 : vector<1x8x8xf32>
    %cst_8 = arith.constant dense<0.000000e+00> : vector<1x8xf32>
    %26 = vector.multi_reduction <add>, %25, %cst_8 [2] : vector<1x8x8xf32> to vector<1x8xf32>
    %27 = vector.shape_cast %26 : vector<1x8xf32> to vector<1x8x1xf32>
    %28 = tpu.reciprocal %27 {approx = true} : vector<1x8x1xf32> -> vector<1x8x1xf32>
    %29 = vector.broadcast %28 : vector<1x8x1xf32> to vector<1x8x8xf32>
    %30 = arith.mulf %25, %29 : vector<1x8x8xf32>
    %31 = arith.truncf %30 : vector<1x8x8xf32> to vector<1x8x8xbf16>
    "tpu.trace_start"() <{level = 10 : i32, message = "bqk,bkd->bqd"}> : () -> ()
    %cst_9 = arith.constant dense<0.000000e+00> : vector<1x8x8xf32>
    %32 = tpu.matmul %31, %19, %cst_9 {dimension_numbers = #tpu.dot_dimension_numbers<[2], [1], [1], [2], [0, 0, 0, 1, 1, 2], [0], [0]>} : vector<1x8x8xbf16>, vector<1x8x8xbf16>, vector<1x8x8xf32> -> vector<1x8x8xf32>
    "tpu.trace_stop"() : () -> ()
    %33 = arith.truncf %32 : vector<1x8x8xf32> to vector<1x8x8xbf16>
    %34 = vector.extract_strided_slice %10 {offsets = [0, 0, 8], sizes = [1, 8, 8], strides = [1, 1, 1]} : vector<1x8x32xbf16> to vector<1x8x8xbf16>
    %35 = vector.extract_strided_slice %13 {offsets = [0, 0, 8], sizes = [1, 8, 8], strides = [1, 1, 1]} : vector<1x8x32xbf16> to vector<1x8x8xbf16>
    %36 = vector.extract_strided_slice %16 {offsets = [0, 0, 8], sizes = [1, 8, 8], strides = [1, 1, 1]} : vector<1x8x32xbf16> to vector<1x8x8xbf16>
    "tpu.trace_start"() <{level = 10 : i32, message = "bqd,bkd->bqk"}> : () -> ()
    %cst_10 = arith.constant dense<0.000000e+00> : vector<1x8x8xf32>
    %37 = tpu.matmul %34, %35, %cst_10 {dimension_numbers = #tpu.dot_dimension_numbers<[2], [2], [1], [1], [0, 0, 0, 1, 1, 1], [0], [0]>} : vector<1x8x8xbf16>, vector<1x8x8xbf16>, vector<1x8x8xf32> -> vector<1x8x8xf32>
    "tpu.trace_stop"() : () -> ()
    %cst_11 = arith.constant dense<0xFF800000> : vector<1x8xf32>
    %38 = vector.multi_reduction <maximumf>, %37, %cst_11 [2] : vector<1x8x8xf32> to vector<1x8xf32>
    %39 = vector.shape_cast %38 : vector<1x8xf32> to vector<1x8x1xf32>
    %40 = vector.broadcast %39 : vector<1x8x1xf32> to vector<1x8x8xf32>
    %41 = arith.subf %37, %40 : vector<1x8x8xf32>
    %42 = math.exp %41 : vector<1x8x8xf32>
    %cst_12 = arith.constant dense<0.000000e+00> : vector<1x8xf32>
    %43 = vector.multi_reduction <add>, %42, %cst_12 [2] : vector<1x8x8xf32> to vector<1x8xf32>
    %44 = vector.shape_cast %43 : vector<1x8xf32> to vector<1x8x1xf32>
    %45 = tpu.reciprocal %44 {approx = true} : vector<1x8x1xf32> -> vector<1x8x1xf32>
    %46 = vector.broadcast %45 : vector<1x8x1xf32> to vector<1x8x8xf32>
    %47 = arith.mulf %42, %46 : vector<1x8x8xf32>
    %48 = arith.truncf %47 : vector<1x8x8xf32> to vector<1x8x8xbf16>
    "tpu.trace_start"() <{level = 10 : i32, message = "bqk,bkd->bqd"}> : () -> ()
    %cst_13 = arith.constant dense<0.000000e+00> : vector<1x8x8xf32>
    %49 = tpu.matmul %48, %36, %cst_13 {dimension_numbers = #tpu.dot_dimension_numbers<[2], [1], [1], [2], [0, 0, 0, 1, 1, 2], [0], [0]>} : vector<1x8x8xbf16>, vector<1x8x8xbf16>, vector<1x8x8xf32> -> vector<1x8x8xf32>
    "tpu.trace_stop"() : () -> ()
    %50 = arith.truncf %49 : vector<1x8x8xf32> to vector<1x8x8xbf16>
    %51 = vector.extract_strided_slice %10 {offsets = [0, 0, 16], sizes = [1, 8, 8], strides = [1, 1, 1]} : vector<1x8x32xbf16> to vector<1x8x8xbf16>
    %52 = vector.extract_strided_slice %13 {offsets = [0, 0, 16], sizes = [1, 8, 8], strides = [1, 1, 1]} : vector<1x8x32xbf16> to vector<1x8x8xbf16>
    %53 = vector.extract_strided_slice %16 {offsets = [0, 0, 16], sizes = [1, 8, 8], strides = [1, 1, 1]} : vector<1x8x32xbf16> to vector<1x8x8xbf16>
    "tpu.trace_start"() <{level = 10 : i32, message = "bqd,bkd->bqk"}> : () -> ()
    %cst_14 = arith.constant dense<0.000000e+00> : vector<1x8x8xf32>
    %54 = tpu.matmul %51, %52, %cst_14 {dimension_numbers = #tpu.dot_dimension_numbers<[2], [2], [1], [1], [0, 0, 0, 1, 1, 1], [0], [0]>} : vector<1x8x8xbf16>, vector<1x8x8xbf16>, vector<1x8x8xf32> -> vector<1x8x8xf32>
    "tpu.trace_stop"() : () -> ()
    %cst_15 = arith.constant dense<0xFF800000> : vector<1x8xf32>
    %55 = vector.multi_reduction <maximumf>, %54, %cst_15 [2] : vector<1x8x8xf32> to vector<1x8xf32>
    %56 = vector.shape_cast %55 : vector<1x8xf32> to vector<1x8x1xf32>
    %57 = vector.broadcast %56 : vector<1x8x1xf32> to vector<1x8x8xf32>
    %58 = arith.subf %54, %57 : vector<1x8x8xf32>
    %59 = math.exp %58 : vector<1x8x8xf32>
    %cst_16 = arith.constant dense<0.000000e+00> : vector<1x8xf32>
    %60 = vector.multi_reduction <add>, %59, %cst_16 [2] : vector<1x8x8xf32> to vector<1x8xf32>
    %61 = vector.shape_cast %60 : vector<1x8xf32> to vector<1x8x1xf32>
    %62 = tpu.reciprocal %61 {approx = true} : vector<1x8x1xf32> -> vector<1x8x1xf32>
    %63 = vector.broadcast %62 : vector<1x8x1xf32> to vector<1x8x8xf32>
    %64 = arith.mulf %59, %63 : vector<1x8x8xf32>
    %65 = arith.truncf %64 : vector<1x8x8xf32> to vector<1x8x8xbf16>
    "tpu.trace_start"() <{level = 10 : i32, message = "bqk,bkd->bqd"}> : () -> ()
    %cst_17 = arith.constant dense<0.000000e+00> : vector<1x8x8xf32>
    %66 = tpu.matmul %65, %53, %cst_17 {dimension_numbers = #tpu.dot_dimension_numbers<[2], [1], [1], [2], [0, 0, 0, 1, 1, 2], [0], [0]>} : vector<1x8x8xbf16>, vector<1x8x8xbf16>, vector<1x8x8xf32> -> vector<1x8x8xf32>
    "tpu.trace_stop"() : () -> ()
    %67 = arith.truncf %66 : vector<1x8x8xf32> to vector<1x8x8xbf16>
    %68 = vector.extract_strided_slice %10 {offsets = [0, 0, 24], sizes = [1, 8, 8], strides = [1, 1, 1]} : vector<1x8x32xbf16> to vector<1x8x8xbf16>
    %69 = vector.extract_strided_slice %13 {offsets = [0, 0, 24], sizes = [1, 8, 8], strides = [1, 1, 1]} : vector<1x8x32xbf16> to vector<1x8x8xbf16>
    %70 = vector.extract_strided_slice %16 {offsets = [0, 0, 24], sizes = [1, 8, 8], strides = [1, 1, 1]} : vector<1x8x32xbf16> to vector<1x8x8xbf16>
    "tpu.trace_start"() <{level = 10 : i32, message = "bqd,bkd->bqk"}> : () -> ()
    %cst_18 = arith.constant dense<0.000000e+00> : vector<1x8x8xf32>
    %71 = tpu.matmul %68, %69, %cst_18 {dimension_numbers = #tpu.dot_dimension_numbers<[2], [2], [1], [1], [0, 0, 0, 1, 1, 1], [0], [0]>} : vector<1x8x8xbf16>, vector<1x8x8xbf16>, vector<1x8x8xf32> -> vector<1x8x8xf32>
    "tpu.trace_stop"() : () -> ()
    %cst_19 = arith.constant dense<0xFF800000> : vector<1x8xf32>
    %72 = vector.multi_reduction <maximumf>, %71, %cst_19 [2] : vector<1x8x8xf32> to vector<1x8xf32>
    %73 = vector.shape_cast %72 : vector<1x8xf32> to vector<1x8x1xf32>
    %74 = vector.broadcast %73 : vector<1x8x1xf32> to vector<1x8x8xf32>
    %75 = arith.subf %71, %74 : vector<1x8x8xf32>
    %76 = math.exp %75 : vector<1x8x8xf32>
    %cst_20 = arith.constant dense<0.000000e+00> : vector<1x8xf32>
    %77 = vector.multi_reduction <add>, %76, %cst_20 [2] : vector<1x8x8xf32> to vector<1x8xf32>
    %78 = vector.shape_cast %77 : vector<1x8xf32> to vector<1x8x1xf32>
    %79 = tpu.reciprocal %78 {approx = true} : vector<1x8x1xf32> -> vector<1x8x1xf32>
    %80 = vector.broadcast %79 : vector<1x8x1xf32> to vector<1x8x8xf32>
    %81 = arith.mulf %76, %80 : vector<1x8x8xf32>
    %82 = arith.truncf %81 : vector<1x8x8xf32> to vector<1x8x8xbf16>
    "tpu.trace_start"() <{level = 10 : i32, message = "bqk,bkd->bqd"}> : () -> ()
    %cst_21 = arith.constant dense<0.000000e+00> : vector<1x8x8xf32>
    %83 = tpu.matmul %82, %70, %cst_21 {dimension_numbers = #tpu.dot_dimension_numbers<[2], [1], [1], [2], [0, 0, 0, 1, 1, 2], [0], [0]>} : vector<1x8x8xbf16>, vector<1x8x8xbf16>, vector<1x8x8xf32> -> vector<1x8x8xf32>
    "tpu.trace_stop"() : () -> ()
    %84 = arith.truncf %83 : vector<1x8x8xf32> to vector<1x8x8xbf16>
    %85 = tpu.concatenate %33, %50, %67, %84 in 2 : vector<1x8x8xbf16>, vector<1x8x8xbf16>, vector<1x8x8xbf16>, vector<1x8x8xbf16> -> vector<1x8x32xbf16>
    %86 = vector.shape_cast %85 : vector<1x8x32xbf16> to vector<8x32xbf16>
    %c0_22 = arith.constant 0 : index
    %c0_23 = arith.constant 0 : index
    %87 = vector.load %arg4[%c0_22, %c0_23] : memref<32x32xbf16, #tpu.memory_space<vmem>>, vector<32x32xbf16>
    %cst_24 = arith.constant dense<0.000000e+00> : vector<8x32xf32>
    %88 = tpu.matmul %86, %87, %cst_24 {dimension_numbers = #tpu.dot_dimension_numbers<[1], [0], [0], [1], [0, 0, 1, 1], [], []>} : vector<8x32xbf16>, vector<32x32xbf16>, vector<8x32xf32> -> vector<8x32xf32>
    %c0_25 = arith.constant 0 : index
    %c0_26 = arith.constant 0 : index
    %89 = vector.load %arg5[%c0_25, %c0_26] : memref<1x32xf32, #tpu.memory_space<vmem>>, vector<1x32xf32>
    %90 = vector.broadcast %89 : vector<1x32xf32> to vector<8x32xf32>
    %91 = arith.addf %88, %90 : vector<8x32xf32>
    %92 = arith.addf %1, %91 : vector<8x32xf32>
    %93 = arith.truncf %92 : vector<8x32xf32> to vector<8x32xbf16>
    %c0_27 = arith.constant 0 : index
    %c0_28 = arith.constant 0 : index
    %94 = vector.load %arg6[%c0_27, %c0_28] : memref<32x64xbf16, #tpu.memory_space<vmem>>, vector<32x64xbf16>
    %cst_29 = arith.constant dense<0.000000e+00> : vector<8x64xf32>
    %95 = tpu.matmul %93, %94, %cst_29 {dimension_numbers = #tpu.dot_dimension_numbers<[1], [0], [0], [1], [0, 0, 1, 1], [], []>} : vector<8x32xbf16>, vector<32x64xbf16>, vector<8x64xf32> -> vector<8x64xf32>
    %c0_30 = arith.constant 0 : index
    %c0_31 = arith.constant 0 : index
    %96 = vector.load %arg7[%c0_30, %c0_31] : memref<1x64xf32, #tpu.memory_space<vmem>>, vector<1x64xf32>
    %97 = vector.broadcast %96 : vector<1x64xf32> to vector<8x64xf32>
    %98 = arith.addf %95, %97 : vector<8x64xf32>
    %cst_32 = arith.constant 0.000000e+00 : f32
    %99 = vector.broadcast %cst_32 : f32 to vector<8x64xf32>
    %100 = arith.maximumf %98, %99 : vector<8x64xf32>
    %101 = arith.truncf %100 : vector<8x64xf32> to vector<8x64xbf16>
    %c0_33 = arith.constant 0 : index
    %c0_34 = arith.constant 0 : index
    %102 = vector.load %arg8[%c0_33, %c0_34] : memref<64x32xbf16, #tpu.memory_space<vmem>>, vector<64x32xbf16>
    %cst_35 = arith.constant dense<0.000000e+00> : vector<8x32xf32>
    %103 = tpu.matmul %101, %102, %cst_35 {dimension_numbers = #tpu.dot_dimension_numbers<[1], [0], [0], [1], [0, 0, 1, 1], [], []>} : vector<8x64xbf16>, vector<64x32xbf16>, vector<8x32xf32> -> vector<8x32xf32>
    %c0_36 = arith.constant 0 : index
    %c0_37 = arith.constant 0 : index
    %104 = vector.load %arg9[%c0_36, %c0_37] : memref<1x32xf32, #tpu.memory_space<vmem>>, vector<1x32xf32>
    %105 = vector.broadcast %104 : vector<1x32xf32> to vector<8x32xf32>
    %106 = arith.addf %103, %105 : vector<8x32xf32>
    %107 = arith.addf %92, %106 : vector<8x32xf32>
    %108 = vector.shape_cast %107 : vector<8x32xf32> to vector<1x8x32xf32>
    %c0_38 = arith.constant 0 : index
    %c0_39 = arith.constant 0 : index
    %c0_40 = arith.constant 0 : index
    %109 = vector.load %arg10[%c0_38, %c0_39, %c0_40] : memref<1x8x32xf32, #tpu.memory_space<vmem>>, vector<1x8x32xf32>
    tpu.vector_store %arg10[%c0_38, %c0_39, %c0_40], %108 {strides = array<i32>} : memref<1x8x32xf32, #tpu.memory_space<vmem>>, vector<1x8x32xf32>,
    return
  }
  func.func @transform_0(%arg0: i32) -> (i32, i32, i32) {
    %c0_i32 = arith.constant 0 : i32
    %c0_i32_0 = arith.constant 0 : i32
    %c0_i32_1 = arith.constant 0 : i32
    return %arg0, %c0_i32, %c0_i32_0 : i32, i32, i32
  }
  func.func @transform_1(%arg0: i32) -> (i32, i32) {
    %c0_i32 = arith.constant 0 : i32
    %c0_i32_0 = arith.constant 0 : i32
    %c0_i32_1 = arith.constant 0 : i32
    return %c0_i32, %c0_i32_0 : i32, i32
  }
  func.func @transform_2(%arg0: i32) -> (i32, i32) {
    %c0_i32 = arith.constant 0 : i32
    %c0_i32_0 = arith.constant 0 : i32
    %c0_i32_1 = arith.constant 0 : i32
    return %c0_i32, %c0_i32_0 : i32, i32
  }
  func.func @transform_3(%arg0: i32) -> (i32, i32) {
    %c0_i32 = arith.constant 0 : i32
    %c0_i32_0 = arith.constant 0 : i32
    %c0_i32_1 = arith.constant 0 : i32
    return %c0_i32, %c0_i32_0 : i32, i32
  }
  func.func @transform_4(%arg0: i32) -> (i32, i32) {
    %c0_i32 = arith.constant 0 : i32
    %c0_i32_0 = arith.constant 0 : i32
    %c0_i32_1 = arith.constant 0 : i32
    return %c0_i32, %c0_i32_0 : i32, i32
  }
  func.func @transform_5(%arg0: i32) -> (i32, i32) {
    %c0_i32 = arith.constant 0 : i32
    %c0_i32_0 = arith.constant 0 : i32
    %c0_i32_1 = arith.constant 0 : i32
    return %c0_i32, %c0_i32_0 : i32, i32
  }
  func.func @transform_6(%arg0: i32) -> (i32, i32) {
    %c0_i32 = arith.constant 0 : i32
    %c0_i32_0 = arith.constant 0 : i32
    %c0_i32_1 = arith.constant 0 : i32
    return %c0_i32, %c0_i32_0 : i32, i32
  }
  func.func @transform_7(%arg0: i32) -> (i32, i32) {
    %c0_i32 = arith.constant 0 : i32
    %c0_i32_0 = arith.constant 0 : i32
    %c0_i32_1 = arith.constant 0 : i32
    return %c0_i32, %c0_i32_0 : i32, i32
  }
  func.func @transform_8(%arg0: i32) -> (i32, i32) {
    %c0_i32 = arith.constant 0 : i32
    %c0_i32_0 = arith.constant 0 : i32
    %c0_i32_1 = arith.constant 0 : i32
    return %c0_i32, %c0_i32_0 : i32, i32
  }
  func.func @transform_9(%arg0: i32) -> (i32, i32, i32) {
    %c0_i32 = arith.constant 0 : i32
    %c0_i32_0 = arith.constant 0 : i32
    %c0_i32_1 = arith.constant 0 : i32
    return %arg0, %c0_i32, %c0_i32_0 : i32, i32, i32
  }
}

</mosaic_0001>

<llo_original>
// kernel: tpu_custom_call.1
$region0: #{tpu_custom_call.1}
  #allocation0 [shape = 'u32[]', space=smem, size = 0x4, offset = 0x4, fixed_abs, tag = 'smem constant byte address 0x4 - core index']
  #allocation1 [shape = 'u32[144,128]{1,0:T(1,128)}', space=vmem, size = 0x12000, scoped, tag = 'internal scratch']
  %s0 = inlined_call_operand.vmem [shape: f32[2,8,32], index: 0, kind: input, shape index: {}]
  %s1 = inlined_call_operand.vmem [shape: bf16[32,96], index: 1, kind: input, shape index: {}]
  %s2 = inlined_call_operand.vmem [shape: f32[1,96], index: 2, kind: input, shape index: {}]
  %s3 = inlined_call_operand.vmem [shape: bf16[32,32], index: 3, kind: input, shape index: {}]
  %s4 = inlined_call_operand.vmem [shape: f32[1,32], index: 4, kind: input, shape index: {}]
  %s5 = inlined_call_operand.hbm [shape: bf16[32,64], index: 5, kind: input, shape index: {}]
  %s6 = inlined_call_operand.vmem [shape: f32[1,64], index: 6, kind: input, shape index: {}]
  %s7 = inlined_call_operand.vmem [shape: bf16[64,32], index: 7, kind: input, shape index: {}]
  %s8 = inlined_call_operand.vmem [shape: f32[1,32], index: 8, kind: input, shape index: {}]
  %s9 = inlined_call_operand.hbm [shape: f32[2,8,32], index: 9, kind: output, shape index: {}]
  %s10 = sld [smem:[#allocation0]]
  $region73: #{tpu_custom_call.1} parent=0
    _
  %s12 = ssub.s32 1, %s10
  %s13 = scalar_select 0, %s12, %s10
  $region1: #{tpu_custom_call.1} parent=0
    #allocation2 [shape = 'u8[8192]{0}', space=vmem, size = 0x2000, scoped, tag = 'input window, operand 5, single buffered']
    #allocation3 [shape = 's32[2]{0}', space=sflag, size = 0x8, scoped, tag = 'scoped memory for tpu_custom_call.1']
    #allocation4 [shape = 's32[2]{0}', space=sflag, size = 0x8, scoped, tag = 'scoped memory for tpu_custom_call.1']
    #allocation5 [shape = 'u8[8192]{0}', space=vmem, size = 0x2000, scoped, tag = 'output window, operand 0']
    %14 = vsyncpa [#allocation3], 0
    %15 = vsyncpa [#allocation4], 0
    %s16 = scalar_lea.sflag [#allocation4], 1
    %17 = vsyncpa %s16, 0
    loop: start=0, step=1, limit=4
    $region2: #{tpu_custom_call.1} parent=1 // loop_pre_header
      _
    $region3: #{tpu_custom_call.1} parent=1 // loop_header
      %s19 = sphi 0, %s23
      %p20 = scmp.ge.s32.totalorder %s19, 4
      %s29 = sphi 0, %s31
      %s32 = sphi 0, %s29
      %s33 = sphi 0, %s32
      %s49 = sphi 0, %s33
      %s53 = sphi 0, %s53
      %s55 = sphi 0, %s53
      %s56 = sphi 0, %s55
      %s70 = sphi 0, %s56
      %s74 = sphi 0, %s74
      %s76 = sphi 0, %s74
      %s77 = sphi 0, %s76
      %s91 = sphi 0, %s77
      %s95 = sphi 0, %s95
      %s97 = sphi 0, %s95
      %s98 = sphi 0, %s97
      %s112 = sphi 0, %s98
      %s116 = sphi 0, %s116
      %s118 = sphi 0, %s116
      %s119 = sphi 0, %s118
      %s133 = sphi 0, %s119
      %s137 = sphi 0, %s137
      %s139 = sphi 0, %s137
      %s140 = sphi 0, %s139
      %s154 = sphi 0, %s140
      %s158 = sphi 0, %s158
      %s160 = sphi 0, %s158
      %s161 = sphi 0, %s160
      %s175 = sphi 0, %s161
      %s179 = sphi 0, %s179
      %s181 = sphi 0, %s179
      %s182 = sphi 0, %s181
      %s196 = sphi 0, %s182
      %s200 = sphi 0, %s200
      %s202 = sphi 0, %s200
      %s203 = sphi 0, %s202
      %s217 = sphi 0, %s203
      %s223 = sphi 0, %s225
      %s226 = sphi 0, %s223
      %s227 = sphi 0, %s226
      %s243 = sphi 0, %s227
    $region4: #{tpu_custom_call.1} parent=1 // loop_header_branch
      %22 = sbr.rel (%p20) target = $region8
    $region5: #{tpu_custom_call.1} parent=1 // loop_body
      %s24 = ssub.s32 %s19, 1
      %s25 = ssub.s32 %s19, 2
      %s26 = sadd.s32 %s19, 1
      %s27 = ssub.s32 %s19, %s26
      %p28 = scmp.eq.s32.totalorder %s27, 0
      %s30 = sadd.s32 %s29, 1
      %s31 = scalar_select %p28, %s29, %s30
      %p34 = pneg %p28
      %p35 = scmp.eq.s32.totalorder %s19, 1
      %p36 = por %p34, %p35
      %p37 = scmp.ne.s32.totalorder %s29, %s32
      %p38 = scmp.eq.s32.totalorder %s19, 0
      %p39 = por %p37, %p38
      %p40 = scmp.ne.s32.totalorder %s29, %s32
      %p41 = scmp.eq.s32.totalorder %s24, 1
      %p42 = por %p40, %p41
      %p43 = scmp.ne.s32.totalorder %s32, %s33
      %p44 = scmp.eq.s32.totalorder %s24, 0
      %p45 = por %p43, %p44
      %p46 = scmp.ne.s32.totalorder %s32, %s33
      %p47 = scmp.eq.s32.totalorder %s25, 1
      %p48 = por %p46, %p47
      %p50 = scmp.ne.s32.totalorder %s33, %s49
      %p51 = scmp.eq.s32.totalorder %s25, 0
      %p52 = por %p50, %p51
      %s54 = sadd.s32 %s53, 1
      %p57 = scmp.eq.s32.totalorder %s19, 1
      %p58 = scmp.ne.s32.totalorder %s53, %s55
      %p59 = scmp.eq.s32.totalorder %s19, 0
      %p60 = por %p58, %p59
      %p61 = scmp.ne.s32.totalorder %s53, %s55
      %p62 = scmp.eq.s32.totalorder %s24, 1
      %p63 = por %p61, %p62
      %p64 = scmp.ne.s32.totalorder %s55, %s56
      %p65 = scmp.eq.s32.totalorder %s24, 0
      %p66 = por %p64, %p65
      %p67 = scmp.ne.s32.totalorder %s55, %s56
      %p68 = scmp.eq.s32.totalorder %s25, 1
      %p69 = por %p67, %p68
      %p71 = scmp.ne.s32.totalorder %s56, %s70
      %p72 = scmp.eq.s32.totalorder %s25, 0
      %p73 = por %p71, %p72
      %s75 = sadd.s32 %s74, 1
      %p78 = scmp.eq.s32.totalorder %s19, 1
      %p79 = scmp.ne.s32.totalorder %s74, %s76
      %p80 = scmp.eq.s32.totalorder %s19, 0
      %p81 = por %p79, %p80
      %p82 = scmp.ne.s32.totalorder %s74, %s76
      %p83 = scmp.eq.s32.totalorder %s24, 1
      %p84 = por %p82, %p83
      %p85 = scmp.ne.s32.totalorder %s76, %s77
      %p86 = scmp.eq.s32.totalorder %s24, 0
      %p87 = por %p85, %p86
      %p88 = scmp.ne.s32.totalorder %s76, %s77
      %p89 = scmp.eq.s32.totalorder %s25, 1
      %p90 = por %p88, %p89
      %p92 = scmp.ne.s32.totalorder %s77, %s91
      %p93 = scmp.eq.s32.totalorder %s25, 0
      %p94 = por %p92, %p93
      %s96 = sadd.s32 %s95, 1
      %p99 = scmp.eq.s32.totalorder %s19, 1
      %p100 = scmp.ne.s32.totalorder %s95, %s97
      %p101 = scmp.eq.s32.totalorder %s19, 0
      %p102 = por %p100, %p101
      %p103 = scmp.ne.s32.totalorder %s95, %s97
      %p104 = scmp.eq.s32.totalorder %s24, 1
      %p105 = por %p103, %p104
      %p106 = scmp.ne.s32.totalorder %s97, %s98
      %p107 = scmp.eq.s32.totalorder %s24, 0
      %p108 = por %p106, %p107
      %p109 = scmp.ne.s32.totalorder %s97, %s98
      %p110 = scmp.eq.s32.totalorder %s25, 1
      %p111 = por %p109, %p110
      %p113 = scmp.ne.s32.totalorder %s98, %s112
      %p114 = scmp.eq.s32.totalorder %s25, 0
      %p115 = por %p113, %p114
      %s117 = sadd.s32 %s116, 1
      %p120 = scmp.eq.s32.totalorder %s19, 1
      %p121 = scmp.ne.s32.totalorder %s116, %s118
      %p122 = scmp.eq.s32.totalorder %s19, 0
      %p123 = por %p121, %p122
      %p124 = scmp.ne.s32.totalorder %s116, %s118
      %p125 = scmp.eq.s32.totalorder %s24, 1
      %p126 = por %p124, %p125
      %p127 = scmp.ne.s32.totalorder %s118, %s119
      %p128 = scmp.eq.s32.totalorder %s24, 0
      %p129 = por %p127, %p128
      %p130 = scmp.ne.s32.totalorder %s118, %s119
      %p131 = scmp.eq.s32.totalorder %s25, 1
      %p132 = por %p130, %p131
      %p134 = scmp.ne.s32.totalorder %s119, %s133
      %p135 = scmp.eq.s32.totalorder %s25, 0
      %p136 = por %p134, %p135
      %s138 = sadd.s32 %s137, 1
      %p141 = scmp.eq.s32.totalorder %s19, 1
      %p142 = scmp.ne.s32.totalorder %s137, %s139
      %p143 = scmp.eq.s32.totalorder %s19, 0
      %p144 = por %p142, %p143
      %p145 = scmp.ne.s32.totalorder %s137, %s139
      %p146 = scmp.eq.s32.totalorder %s24, 1
      %p147 = por %p145, %p146
      %p148 = scmp.ne.s32.totalorder %s139, %s140
      %p149 = scmp.eq.s32.totalorder %s24, 0
      %p150 = por %p148, %p149
      %p151 = scmp.ne.s32.totalorder %s139, %s140
      %p152 = scmp.eq.s32.totalorder %s25, 1
      %p153 = por %p151, %p152
      %p155 = scmp.ne.s32.totalorder %s140, %s154
      %p156 = scmp.eq.s32.totalorder %s25, 0
      %p157 = por %p155, %p156
      %s159 = sadd.s32 %s158, 1
      %p162 = scmp.eq.s32.totalorder %s19, 1
      %p163 = scmp.ne.s32.totalorder %s158, %s160
      %p164 = scmp.eq.s32.totalorder %s19, 0
      %p165 = por %p163, %p164
      %p166 = scmp.ne.s32.totalorder %s158, %s160
      %p167 = scmp.eq.s32.totalorder %s24, 1
      %p168 = por %p166, %p167
      %p169 = scmp.ne.s32.totalorder %s160, %s161
      %p170 = scmp.eq.s32.totalorder %s24, 0
      %p171 = por %p169, %p170
      %p172 = scmp.ne.s32.totalorder %s160, %s161
      %p173 = scmp.eq.s32.totalorder %s25, 1
      %p174 = por %p172, %p173
      %p176 = scmp.ne.s32.totalorder %s161, %s175
      %p177 = scmp.eq.s32.totalorder %s25, 0
      %p178 = por %p176, %p177
      %s180 = sadd.s32 %s179, 1
      %p183 = scmp.eq.s32.totalorder %s19, 1
      %p184 = scmp.ne.s32.totalorder %s179, %s181
      %p185 = scmp.eq.s32.totalorder %s19, 0
      %p186 = por %p184, %p185
      %p187 = scmp.ne.s32.totalorder %s179, %s181
      %p188 = scmp.eq.s32.totalorder %s24, 1
      %p189 = por %p187, %p188
      %p190 = scmp.ne.s32.totalorder %s181, %s182
      %p191 = scmp.eq.s32.totalorder %s24, 0
      %p192 = por %p190, %p191
      %p193 = scmp.ne.s32.totalorder %s181, %s182
      %p194 = scmp.eq.s32.totalorder %s25, 1
      %p195 = por %p193, %p194
      %p197 = scmp.ne.s32.totalorder %s182, %s196
      %p198 = scmp.eq.s32.totalorder %s25, 0
      %p199 = por %p197, %p198
      %s201 = sadd.s32 %s200, 1
      %p204 = scmp.eq.s32.totalorder %s19, 1
      %p205 = scmp.ne.s32.totalorder %s200, %s202
      %p206 = scmp.eq.s32.totalorder %s19, 0
      %p207 = por %p205, %p206
      %p208 = scmp.ne.s32.totalorder %s200, %s202
      %p209 = scmp.eq.s32.totalorder %s24, 1
      %p210 = por %p208, %p209
      %p211 = scmp.ne.s32.totalorder %s202, %s203
      %p212 = scmp.eq.s32.totalorder %s24, 0
      %p213 = por %p211, %p212
      %p214 = scmp.ne.s32.totalorder %s202, %s203
      %p215 = scmp.eq.s32.totalorder %s25, 1
      %p216 = por %p214, %p215
      %p218 = scmp.ne.s32.totalorder %s203, %s217
      %p219 = scmp.eq.s32.totalorder %s25, 0
      %p220 = por %p218, %p219
      %s221 = ssub.s32 %s19, %s26
      %p222 = scmp.eq.s32.totalorder %s221, 0
      %s224 = sadd.s32 %s223, 1
      %s225 = scalar_select %p222, %s223, %s224
      %p228 = pneg %p222
      %p229 = scmp.eq.s32.totalorder %s19, 1
      %p230 = por %p228, %p229
      %p231 = scmp.ne.s32.totalorder %s223, %s226
      %p232 = scmp.eq.s32.totalorder %s19, 0
      %p233 = por %p231, %p232
      %p234 = scmp.ne.s32.totalorder %s223, %s226
      %p235 = scmp.eq.s32.totalorder %s24, 1
      %p236 = por %p234, %p235
      %p237 = scmp.ne.s32.totalorder %s226, %s227
      %p238 = scmp.eq.s32.totalorder %s24, 0
      %p239 = por %p237, %p238
      %p240 = scmp.ne.s32.totalorder %s226, %s227
      %p241 = scmp.eq.s32.totalorder %s25, 1
      %p242 = por %p240, %p241
      %p244 = scmp.ne.s32.totalorder %s227, %s243
      %p245 = scmp.eq.s32.totalorder %s25, 0
      %p246 = por %p244, %p245
      %p247 = scmp.le.s32.totalorder 1, %s19
      %p248 = scmp.lt.s32.totalorder %s19, 3
      %p249 = pnand %p247, %p248
      %p250 = pneg %p249
      // Predicated region
      $region9: #{tpu_custom_call.1} parent=5 // pred_check
        _
      $region10: #{tpu_custom_call.1} parent=5 // pred_check_branch
        %252 = sbr.rel (%p249) target = $region12
      $region11: #{tpu_custom_call.1} parent=5 // pred_region
        %s253 = ssub.s32 %s19, 1
        // Predicated region
        $region13: #{tpu_custom_call.1} parent=11 // pred_check
          %p254 = pneg %p66
        $region14: #{tpu_custom_call.1} parent=11 // pred_check_branch
          %256 = sbr.rel (%p254) target = $region16
        $region15: #{tpu_custom_call.1} parent=11 // pred_region
          _
        $region16: #{tpu_custom_call.1} parent=11 // pred_fallthru
          _
        // Predicated region
        $region17: #{tpu_custom_call.1} parent=11 // pred_check
          %p257 = pneg %p87
        $region18: #{tpu_custom_call.1} parent=11 // pred_check_branch
          %259 = sbr.rel (%p257) target = $region20
        $region19: #{tpu_custom_call.1} parent=11 // pred_region
          _
        $region20: #{tpu_custom_call.1} parent=11 // pred_fallthru
          _
        // Predicated region
        $region21: #{tpu_custom_call.1} parent=11 // pred_check
          %p260 = pneg %p108
        $region22: #{tpu_custom_call.1} parent=11 // pred_check_branch
          %262 = sbr.rel (%p260) target = $region24
        $region23: #{tpu_custom_call.1} parent=11 // pred_region
          _
        $region24: #{tpu_custom_call.1} parent=11 // pred_fallthru
          _
        // Predicated region
        $region25: #{tpu_custom_call.1} parent=11 // pred_check
          %p263 = pneg %p129
        $region26: #{tpu_custom_call.1} parent=11 // pred_check_branch
          %265 = sbr.rel (%p263) target = $region28
        $region27: #{tpu_custom_call.1} parent=11 // pred_region
          _
        $region28: #{tpu_custom_call.1} parent=11 // pred_fallthru
          _
        // Predicated region
        $region29: #{tpu_custom_call.1} parent=11 // pred_check
          %p266 = pneg %p150
        $region30: #{tpu_custom_call.1} parent=11 // pred_check_branch
          %268 = sbr.rel (%p266) target = $region32
        $region31: #{tpu_custom_call.1} parent=11 // pred_region
          %s270 = ssub.s32 256, 256
          %271 = vsyncadd [#allocation3], %s270
          %s272 = sshll.u32 [#allocation2], 4
          %s273 = int_to_ptr.vmem [resolvable:$true] %s272
          %278 = dma.hbm_to_vmem [thread:$0]  %s5, 256, %s273, [#allocation3], 64, 64, 4
        $region32: #{tpu_custom_call.1} parent=11 // pred_fallthru
          _
        // Predicated region
        $region33: #{tpu_custom_call.1} parent=11 // pred_check
          %p279 = pneg %p171
        $region34: #{tpu_custom_call.1} parent=11 // pred_check_branch
          %281 = sbr.rel (%p279) target = $region36
        $region35: #{tpu_custom_call.1} parent=11 // pred_region
          _
        $region36: #{tpu_custom_call.1} parent=11 // pred_fallthru
          _
        // Predicated region
        $region37: #{tpu_custom_call.1} parent=11 // pred_check
          %p282 = pneg %p192
        $region38: #{tpu_custom_call.1} parent=11 // pred_check_branch
          %284 = sbr.rel (%p282) target = $region40
        $region39: #{tpu_custom_call.1} parent=11 // pred_region
          _
        $region40: #{tpu_custom_call.1} parent=11 // pred_fallthru
          _
        // Predicated region
        $region41: #{tpu_custom_call.1} parent=11 // pred_check
          %p285 = pneg %p213
        $region42: #{tpu_custom_call.1} parent=11 // pred_check_branch
          %287 = sbr.rel (%p285) target = $region44
        $region43: #{tpu_custom_call.1} parent=11 // pred_region
          _
        $region44: #{tpu_custom_call.1} parent=11 // pred_fallthru
          _
      $region12: #{tpu_custom_call.1} parent=5 // pred_fallthru
        _
      %p288 = scmp.lt.s32.totalorder %s19, 2
      // Predicated region
      $region45: #{tpu_custom_call.1} parent=5 // pred_check
        %p289 = pneg %p288
      $region46: #{tpu_custom_call.1} parent=5 // pred_check_branch
        %291 = sbr.rel (%p289) target = $region48
      $region47: #{tpu_custom_call.1} parent=5 // pred_region
        // Predicated region
        $region49: #{tpu_custom_call.1} parent=47 // pred_check
          %p292 = pneg %p39
        $region50: #{tpu_custom_call.1} parent=47 // pred_check_branch
          %294 = sbr.rel (%p292) target = $region52
        $region51: #{tpu_custom_call.1} parent=47 // pred_region
          %p295 = scmp.lt.s32.totalorder %s19, 1
          %s296 = scalar_select %p295, %s19, 1
          %s297 = smul.addr %s296, 8
          %s298 = scalar_lea.vmem %s0, %s297
        $region52: #{tpu_custom_call.1} parent=47 // pred_fallthru
          _
      $region48: #{tpu_custom_call.1} parent=5 // pred_fallthru
        _
      %p299 = scmp.le.s32.totalorder 1, %s19
      %p300 = scmp.lt.s32.totalorder %s19, 3
      %p301 = pnand %p299, %p300
      %p302 = pneg %p301
      // Predicated region
      $region53: #{tpu_custom_call.1} parent=5 // pred_check
        _
      $region54: #{tpu_custom_call.1} parent=5 // pred_check_branch
        %304 = sbr.rel (%p301) target = $region56
      $region55: #{tpu_custom_call.1} parent=5 // pred_region
        %s305 = ssub.s32 %s19, 1
        // Predicated region
        $region57: #{tpu_custom_call.1} parent=55 // pred_check
          %p306 = pneg %p150
        $region58: #{tpu_custom_call.1} parent=55 // pred_check_branch
          %308 = sbr.rel (%p306) target = $region60
        $region59: #{tpu_custom_call.1} parent=55 // pred_region
          %309 = dma.done [#allocation3], 256
        $region60: #{tpu_custom_call.1} parent=55 // pred_fallthru
          _
        %p310 = scmp.lt.s32.totalorder %s24, 1
        %s311 = scalar_select %p310, %s24, 1
        %s312 = smul.addr %s311, 8
        %s313 = scalar_lea.vmem %s0, %s312
        %p314 = pneg %p45
        %p315 = pneg %p42
        %p316 = pneg %p66
        %p317 = pneg %p63
        %p318 = pneg %p87
        %p319 = pneg %p84
        %p320 = pneg %p108
        %p321 = pneg %p105
        %p322 = pneg %p129
        %p323 = pneg %p126
        %p324 = pneg %p150
        %p325 = pneg %p147
        %p326 = pneg %p171
        %p327 = pneg %p168
        %p328 = pneg %p192
        %p329 = pneg %p189
        %p330 = pneg %p213
        %p331 = pneg %p210
        %p332 = pneg %p239
        %p333 = pneg %p236
        %s334 = sand.u32 %s226, 1
        %s335 = scalar_lea.sflag [#allocation4], %s334
        %s336 = sand.u32 %s226, 1
        %s337 = smul.addr %s336, 8
        %s338 = scalar_lea.vmem [#allocation5], %s337
        %p339 = scmp.lt.s32.totalorder %s24, 1
        %s340 = scalar_select %p339, %s24, 1
        %s341 = smul.addr %s340, 8
        %s342 = scalar_lea.vmem %s0, %s341
        %v344 = vld [vmem:[%s342] sm:$0xff]
        %v345 = vpack.c.bf16 %v344, %v344
        %v346 = vld [vmem:[%s1] sm:$0xf]
        %v347 = vld [vmem:[%s1 + $0x4] sm:$0xf]
        %v348 = vld [vmem:[%s1 + $0x8] sm:$0xf]
        %v349 = vld [vmem:[%s1 + $0xc] sm:$0xf]
        %v350 = vld [vmem:[%s2] sm:$0x1]
        %v352 = vlaneseq
        %v353 = vshrl.u32 %v352, 7
        %v354 = vsub.s32 0, %v353
        %v355 = vrot.slane %v350, %v354
        %v361 = vunpack.c.l.b16 %v346
        %v362 = vunpack.c.l.b16 %v347
        %v363 = vunpack.c.l.b16 %v348
        %v364 = vunpack.c.l.b16 %v349
        %v365 = vpack.c.b16 %v362, %v361
        %v366 = vpack.c.b16 %v364, %v363
        %vm369 = vcmask 261120
        %v371 = vsel %vm369, %v345, 0
        %373 = vmatprep.subr.bf16.mxu0 0
        %374 = vmatpush1.bf16.msra.mxu0 0
        %375 = vmatprep.subr.bf16.mxu0 0
        %376 = vmatpush1.bf16.msra.mxu0 0
        %377 = vmatprep.subr.bf16.mxu0 0
        %378 = vmatpush1.bf16.msra.mxu0 0
        %379 = vmatprep.subr.bf16.mxu0 0
        %380 = vmatpush1.bf16.msra.mxu0 0
        %381 = vmatprep.subr.bf16.mxu0 0
        %382 = vmatpush1.bf16.msra.mxu0 0
        %383 = vmatprep.subr.bf16.mxu0 0
        %384 = vmatpush1.bf16.msra.mxu0 0
        %385 = vmatprep.subr.bf16.mxu0 0
        %386 = vmatpush1.bf16.msra.mxu0 %v366
        %387 = vmatprep.subr.bf16.mxu0 0
        %388 = vmatpush1.bf16.msra.mxu0 %v365
        %389 = vmatprep.subr.bf16.mxu0 0
        %390 = vmatpush2.bf16.msra.mxu0 0
        %391 = vmatprep.subr.bf16.mxu0 0
        %392 = vmatpush2.bf16.msra.mxu0 0
        %393 = vmatprep.subr.bf16.mxu0 0
        %394 = vmatpush2.bf16.msra.mxu0 0
        %395 = vmatprep.subr.bf16.mxu0 0
        %396 = vmatpush2.bf16.msra.mxu0 0
        %397 = vmatprep.subr.bf16.mxu0 0
        %398 = vmatpush2.bf16.msra.mxu0 0
        %399 = vmatprep.subr.bf16.mxu0 0
        %400 = vmatpush2.bf16.msra.mxu0 0
        %401 = vmatprep.subr.bf16.mxu0 0
        %402 = vmatpush2.bf16.msra.mxu0 0
        %403 = vmatprep.subr.bf16.mxu0 0
        %404 = vmatpush2.bf16.msra.mxu0 0
        %405 = vmatprep.mubr.bf16.mxu0 0
        %406 = vmatmul.mubr.bf16.gmra.mxu0 %v371
        %v407 = vpop.f32.mrf.mxu0
        %v408 = vadd.f32 %v355, %v407
        %v409 = vpop.f32.mrf.mxu0
        %v410 = vpop.f32.mrf.mxu0
        %v411 = vpop.f32.mrf.mxu0
        %412 = vdwg.mxu0
        %v413 = vpack.c.bf16 %v408, %v408
        %415 = vrot.lane.b32.xlu0 %v413, 96
        %v416 = vpop.permute.xlu0 %415
        %vm417 = vcmask 64512
        %v419 = vsel %vm417, %v413, 0
        %v422 = vsel %vm417, %v416, 0
        %424 = vmatprep.subr.bf16.mxu0 0
        %425 = vmatpush1.bf16.xpose.msra.mxu0 0
        %426 = vmatprep.subr.bf16.mxu0 0
        %427 = vmatpush1.bf16.xpose.msra.mxu0 0
        %428 = vmatprep.subr.bf16.mxu0 0
        %429 = vmatpush1.bf16.xpose.msra.mxu0 0
        %430 = vmatprep.subr.bf16.mxu0 0
        %431 = vmatpush1.bf16.xpose.msra.mxu0 0
        %432 = vmatprep.subr.bf16.mxu0 0
        %433 = vmatpush1.bf16.xpose.msra.mxu0 0
        %434 = vmatprep.subr.bf16.mxu0 0
        %435 = vmatpush1.bf16.xpose.msra.mxu0 0
        %436 = vmatprep.subr.bf16.mxu0 0
        %437 = vmatpush1.bf16.xpose.msra.mxu0 0
        %438 = vmatprep.subr.bf16.mxu0 0
        %439 = vmatpush1.bf16.xpose.msra.mxu0 %v422
        %440 = vmatprep.subr.bf16.mxu0 0
        %441 = vmatpush2.bf16.xpose.msra.mxu0 0
        %442 = vmatprep.subr.bf16.mxu0 0
        %443 = vmatpush2.bf16.xpose.msra.mxu0 0
        %444 = vmatprep.subr.bf16.mxu0 0
        %445 = vmatpush2.bf16.xpose.msra.mxu0 0
        %446 = vmatprep.subr.bf16.mxu0 0
        %447 = vmatpush2.bf16.xpose.msra.mxu0 0
        %448 = vmatprep.subr.bf16.mxu0 0
        %449 = vmatpush2.bf16.xpose.msra.mxu0 0
        %450 = vmatprep.subr.bf16.mxu0 0
        %451 = vmatpush2.bf16.xpose.msra.mxu0 0
        %452 = vmatprep.subr.bf16.mxu0 0
        %453 = vmatpush2.bf16.xpose.msra.mxu0 0
        %454 = vmatprep.subr.bf16.mxu0 0
        %455 = vmatpush2.bf16.xpose.msra.mxu0 0
        %456 = vmatprep.mubr.bf16.mxu0 0
        %457 = vmatmul.mubr.bf16.gmra.mxu0 %v419
        %v458 = vpop.f32.mrf.mxu0
        %v459 = vadd.f32 0.0, %v458
        %v460 = vpop.f32.mrf.mxu0
        %v461 = vpop.f32.mrf.mxu0
        %v462 = vpop.f32.mrf.mxu0
        %463 = vdwg.mxu0
        %v464 = vsel %vm417, %v459, -inf
        %465 = vmax.xlane.f32.xlu0 %v464
        %v466 = vpop.xlane.xlu0 %465
        %v467 = vsub.f32 %v459, %v466
        %v468 = vmul.f32 %v467, 1.442695
        %v469 = vpow.pop %v468
        %v470 = vsel %vm417, %v469, 0.0
        %471 = vadd.xlane.f32.xlu0 %v470
        %v472 = vpop.xlane.xlu0 %471
        %v473 = vrcp.pop %v472
        %v474 = vmul.f32 %v469, %v473
        %v475 = vpack.c.bf16 %v474, %v474
        %476 = vrot.lane.b32.xlu0 %v413, 64
        %v477 = vpop.permute.xlu0 %476
        %v479 = vsel %vm417, %v475, 0
        %vm481 = vcmask 1043456
        %v483 = vsel %vm481, %v477, 0
        %485 = vmatprep.subr.bf16.mxu0 0
        %486 = vmatpush1.bf16.msra.mxu0 0
        %487 = vmatprep.subr.bf16.mxu0 0
        %488 = vmatpush1.bf16.msra.mxu0 0
        %489 = vmatprep.subr.bf16.mxu0 0
        %490 = vmatpush1.bf16.msra.mxu0 0
        %491 = vmatprep.subr.bf16.mxu0 0
        %492 = vmatpush1.bf16.msra.mxu0 0
        %493 = vmatprep.subr.bf16.mxu0 0
        %494 = vmatpush1.bf16.msra.mxu0 0
        %495 = vmatprep.subr.bf16.mxu0 0
        %496 = vmatpush1.bf16.msra.mxu0 0
        %497 = vmatprep.subr.bf16.mxu0 0
        %498 = vmatpush1.bf16.msra.mxu0 0
        %499 = vmatprep.subr.bf16.mxu0 0
        %500 = vmatpush1.bf16.msra.mxu0 %v483
        %501 = vmatprep.subr.bf16.mxu0 0
        %502 = vmatpush2.bf16.msra.mxu0 0
        %503 = vmatprep.subr.bf16.mxu0 0
        %504 = vmatpush2.bf16.msra.mxu0 0
        %505 = vmatprep.subr.bf16.mxu0 0
        %506 = vmatpush2.bf16.msra.mxu0 0
        %507 = vmatprep.subr.bf16.mxu0 0
        %508 = vmatpush2.bf16.msra.mxu0 0
        %509 = vmatprep.subr.bf16.mxu0 0
        %510 = vmatpush2.bf16.msra.mxu0 0
        %511 = vmatprep.subr.bf16.mxu0 0
        %512 = vmatpush2.bf16.msra.mxu0 0
        %513 = vmatprep.subr.bf16.mxu0 0
        %514 = vmatpush2.bf16.msra.mxu0 0
        %515 = vmatprep.subr.bf16.mxu0 0
        %516 = vmatpush2.bf16.msra.mxu0 0
        %517 = vmatprep.mubr.bf16.mxu0 0
        %518 = vmatmul.mubr.bf16.gmra.mxu0 %v479
        %v519 = vpop.f32.mrf.mxu0
        %v520 = vadd.f32 0.0, %v519
        %v521 = vpop.f32.mrf.mxu0
        %v522 = vpop.f32.mrf.mxu0
        %v523 = vpop.f32.mrf.mxu0
        %524 = vdwg.mxu0
        %v525 = vpack.c.bf16 %v520, %v520
        %526 = vrot.lane.b32.xlu0 %v413, 120
        %v527 = vpop.permute.xlu0 %526
        %528 = vrot.lane.b32.xlu0 %v413, 88
        %v529 = vpop.permute.xlu0 %528
        %v531 = vsel %vm417, %v527, 0
        %v534 = vsel %vm417, %v529, 0
        %536 = vmatprep.subr.bf16.mxu0 0
        %537 = vmatpush1.bf16.xpose.msra.mxu0 0
        %538 = vmatprep.subr.bf16.mxu0 0
        %539 = vmatpush1.bf16.xpose.msra.mxu0 0
        %540 = vmatprep.subr.bf16.mxu0 0
        %541 = vmatpush1.bf16.xpose.msra.mxu0 0
        %542 = vmatprep.subr.bf16.mxu0 0
        %543 = vmatpush1.bf16.xpose.msra.mxu0 0
        %544 = vmatprep.subr.bf16.mxu0 0
        %545 = vmatpush1.bf16.xpose.msra.mxu0 0
        %546 = vmatprep.subr.bf16.mxu0 0
        %547 = vmatpush1.bf16.xpose.msra.mxu0 0
        %548 = vmatprep.subr.bf16.mxu0 0
        %549 = vmatpush1.bf16.xpose.msra.mxu0 0
        %550 = vmatprep.subr.bf16.mxu0 0
        %551 = vmatpush1.bf16.xpose.msra.mxu0 %v534
        %552 = vmatprep.subr.bf16.mxu0 0
        %553 = vmatpush2.bf16.xpose.msra.mxu0 0
        %554 = vmatprep.subr.bf16.mxu0 0
        %555 = vmatpush2.bf16.xpose.msra.mxu0 0
        %556 = vmatprep.subr.bf16.mxu0 0
        %557 = vmatpush2.bf16.xpose.msra.mxu0 0
        %558 = vmatprep.subr.bf16.mxu0 0
        %559 = vmatpush2.bf16.xpose.msra.mxu0 0
        %560 = vmatprep.subr.bf16.mxu0 0
        %561 = vmatpush2.bf16.xpose.msra.mxu0 0
        %562 = vmatprep.subr.bf16.mxu0 0
        %563 = vmatpush2.bf16.xpose.msra.mxu0 0
        %564 = vmatprep.subr.bf16.mxu0 0
        %565 = vmatpush2.bf16.xpose.msra.mxu0 0
        %566 = vmatprep.subr.bf16.mxu0 0
        %567 = vmatpush2.bf16.xpose.msra.mxu0 0
        %568 = vmatprep.mubr.bf16.mxu0 0
        %569 = vmatmul.mubr.bf16.gmra.mxu0 %v531
        %v570 = vpop.f32.mrf.mxu0
        %v571 = vadd.f32 0.0, %v570
        %v572 = vpop.f32.mrf.mxu0
        %v573 = vpop.f32.mrf.mxu0
        %v574 = vpop.f32.mrf.mxu0
        %575 = vdwg.mxu0
        %v576 = vsel %vm417, %v571, -inf
        %577 = vmax.xlane.f32.xlu0 %v576
        %v578 = vpop.xlane.xlu0 %577
        %v579 = vsub.f32 %v571, %v578
        %v580 = vmul.f32 %v579, 1.442695
        %v581 = vpow.pop %v580
        %v582 = vsel %vm417, %v581, 0.0
        %583 = vadd.xlane.f32.xlu0 %v582
        %v584 = vpop.xlane.xlu0 %583
        %v585 = vrcp.pop %v584
        %v586 = vmul.f32 %v581, %v585
        %v587 = vpack.c.bf16 %v586, %v586
        %588 = vrot.lane.b32.xlu0 %v413, 56
        %v589 = vpop.permute.xlu0 %588
        %v591 = vsel %vm417, %v587, 0
        %v594 = vsel %vm481, %v589, 0
        %596 = vmatprep.subr.bf16.mxu0 0
        %597 = vmatpush1.bf16.msra.mxu0 0
        %598 = vmatprep.subr.bf16.mxu0 0
        %599 = vmatpush1.bf16.msra.mxu0 0
        %600 = vmatprep.subr.bf16.mxu0 0
        %601 = vmatpush1.bf16.msra.mxu0 0
        %602 = vmatprep.subr.bf16.mxu0 0
        %603 = vmatpush1.bf16.msra.mxu0 0
        %604 = vmatprep.subr.bf16.mxu0 0
        %605 = vmatpush1.bf16.msra.mxu0 0
        %606 = vmatprep.subr.bf16.mxu0 0
        %607 = vmatpush1.bf16.msra.mxu0 0
        %608 = vmatprep.subr.bf16.mxu0 0
        %609 = vmatpush1.bf16.msra.mxu0 0
        %610 = vmatprep.subr.bf16.mxu0 0
        %611 = vmatpush1.bf16.msra.mxu0 %v594
        %612 = vmatprep.subr.bf16.mxu0 0
        %613 = vmatpush2.bf16.msra.mxu0 0
        %614 = vmatprep.subr.bf16.mxu0 0
        %615 = vmatpush2.bf16.msra.mxu0 0
        %616 = vmatprep.subr.bf16.mxu0 0
        %617 = vmatpush2.bf16.msra.mxu0 0
        %618 = vmatprep.subr.bf16.mxu0 0
        %619 = vmatpush2.bf16.msra.mxu0 0
        %620 = vmatprep.subr.bf16.mxu0 0
        %621 = vmatpush2.bf16.msra.mxu0 0
        %622 = vmatprep.subr.bf16.mxu0 0
        %623 = vmatpush2.bf16.msra.mxu0 0
        %624 = vmatprep.subr.bf16.mxu0 0
        %625 = vmatpush2.bf16.msra.mxu0 0
        %626 = vmatprep.subr.bf16.mxu0 0
        %627 = vmatpush2.bf16.msra.mxu0 0
        %628 = vmatprep.mubr.bf16.mxu0 0
        %629 = vmatmul.mubr.bf16.gmra.mxu0 %v591
        %v630 = vpop.f32.mrf.mxu0
        %v631 = vadd.f32 0.0, %v630
        %v632 = vpop.f32.mrf.mxu0
        %v633 = vpop.f32.mrf.mxu0
        %v634 = vpop.f32.mrf.mxu0
        %635 = vdwg.mxu0
        %v636 = vpack.c.bf16 %v631, %v631
        %637 = vrot.lane.b32.xlu0 %v413, 112
        %v638 = vpop.permute.xlu0 %637
        %639 = vrot.lane.b32.xlu0 %v413, 80
        %v640 = vpop.permute.xlu0 %639
        %v642 = vsel %vm417, %v638, 0
        %v645 = vsel %vm417, %v640, 0
        %647 = vmatprep.subr.bf16.mxu0 0
        %648 = vmatpush1.bf16.xpose.msra.mxu0 0
        %649 = vmatprep.subr.bf16.mxu0 0
        %650 = vmatpush1.bf16.xpose.msra.mxu0 0
        %651 = vmatprep.subr.bf16.mxu0 0
        %652 = vmatpush1.bf16.xpose.msra.mxu0 0
        %653 = vmatprep.subr.bf16.mxu0 0
        %654 = vmatpush1.bf16.xpose.msra.mxu0 0
        %655 = vmatprep.subr.bf16.mxu0 0
        %656 = vmatpush1.bf16.xpose.msra.mxu0 0
        %657 = vmatprep.subr.bf16.mxu0 0
        %658 = vmatpush1.bf16.xpose.msra.mxu0 0
        %659 = vmatprep.subr.bf16.mxu0 0
        %660 = vmatpush1.bf16.xpose.msra.mxu0 0
        %661 = vmatprep.subr.bf16.mxu0 0
        %662 = vmatpush1.bf16.xpose.msra.mxu0 %v645
        %663 = vmatprep.subr.bf16.mxu0 0
        %664 = vmatpush2.bf16.xpose.msra.mxu0 0
        %665 = vmatprep.subr.bf16.mxu0 0
        %666 = vmatpush2.bf16.xpose.msra.mxu0 0
        %667 = vmatprep.subr.bf16.mxu0 0
        %668 = vmatpush2.bf16.xpose.msra.mxu0 0
        %669 = vmatprep.subr.bf16.mxu0 0
        %670 = vmatpush2.bf16.xpose.msra.mxu0 0
        %671 = vmatprep.subr.bf16.mxu0 0
        %672 = vmatpush2.bf16.xpose.msra.mxu0 0
        %673 = vmatprep.subr.bf16.mxu0 0
        %674 = vmatpush2.bf16.xpose.msra.mxu0 0
        %675 = vmatprep.subr.bf16.mxu0 0
        %676 = vmatpush2.bf16.xpose.msra.mxu0 0
        %677 = vmatprep.subr.bf16.mxu0 0
        %678 = vmatpush2.bf16.xpose.msra.mxu0 0
        %679 = vmatprep.mubr.bf16.mxu0 0
        %680 = vmatmul.mubr.bf16.gmra.mxu0 %v642
        %v681 = vpop.f32.mrf.mxu0
        %v682 = vadd.f32 0.0, %v681
        %v683 = vpop.f32.mrf.mxu0
        %v684 = vpop.f32.mrf.mxu0
        %v685 = vpop.f32.mrf.mxu0
        %686 = vdwg.mxu0
        %v687 = vsel %vm417, %v682, -inf
        %688 = vmax.xlane.f32.xlu0 %v687
        %v689 = vpop.xlane.xlu0 %688
        %v690 = vsub.f32 %v682, %v689
        %v691 = vmul.f32 %v690, 1.442695
        %v692 = vpow.pop %v691
        %v693 = vsel %vm417, %v692, 0.0
        %694 = vadd.xlane.f32.xlu0 %v693
        %v695 = vpop.xlane.xlu0 %694
        %v696 = vrcp.pop %v695
        %v697 = vmul.f32 %v692, %v696
        %v698 = vpack.c.bf16 %v697, %v697
        %699 = vrot.lane.b32.xlu0 %v413, 48
        %v700 = vpop.permute.xlu0 %699
        %v702 = vsel %vm417, %v698, 0
        %v705 = vsel %vm481, %v700, 0
        %707 = vmatprep.subr.bf16.mxu0 0
        %708 = vmatpush1.bf16.msra.mxu0 0
        %709 = vmatprep.subr.bf16.mxu0 0
        %710 = vmatpush1.bf16.msra.mxu0 0
        %711 = vmatprep.subr.bf16.mxu0 0
        %712 = vmatpush1.bf16.msra.mxu0 0
        %713 = vmatprep.subr.bf16.mxu0 0
        %714 = vmatpush1.bf16.msra.mxu0 0
        %715 = vmatprep.subr.bf16.mxu0 0
        %716 = vmatpush1.bf16.msra.mxu0 0
        %717 = vmatprep.subr.bf16.mxu0 0
        %718 = vmatpush1.bf16.msra.mxu0 0
        %719 = vmatprep.subr.bf16.mxu0 0
        %720 = vmatpush1.bf16.msra.mxu0 0
        %721 = vmatprep.subr.bf16.mxu0 0
        %722 = vmatpush1.bf16.msra.mxu0 %v705
        %723 = vmatprep.subr.bf16.mxu0 0
        %724 = vmatpush2.bf16.msra.mxu0 0
        %725 = vmatprep.subr.bf16.mxu0 0
        %726 = vmatpush2.bf16.msra.mxu0 0
        %727 = vmatprep.subr.bf16.mxu0 0
        %728 = vmatpush2.bf16.msra.mxu0 0
        %729 = vmatprep.subr.bf16.mxu0 0
        %730 = vmatpush2.bf16.msra.mxu0 0
        %731 = vmatprep.subr.bf16.mxu0 0
        %732 = vmatpush2.bf16.msra.mxu0 0
        %733 = vmatprep.subr.bf16.mxu0 0
        %734 = vmatpush2.bf16.msra.mxu0 0
        %735 = vmatprep.subr.bf16.mxu0 0
        %736 = vmatpush2.bf16.msra.mxu0 0
        %737 = vmatprep.subr.bf16.mxu0 0
        %738 = vmatpush2.bf16.msra.mxu0 0
        %739 = vmatprep.mubr.bf16.mxu0 0
        %740 = vmatmul.mubr.bf16.gmra.mxu0 %v702
        %v741 = vpop.f32.mrf.mxu0
        %v742 = vadd.f32 0.0, %v741
        %v743 = vpop.f32.mrf.mxu0
        %v744 = vpop.f32.mrf.mxu0
        %v745 = vpop.f32.mrf.mxu0
        %746 = vdwg.mxu0
        %v747 = vpack.c.bf16 %v742, %v742
        %748 = vrot.lane.b32.xlu0 %v413, 104
        %v749 = vpop.permute.xlu0 %748
        %750 = vrot.lane.b32.xlu0 %v413, 72
        %v751 = vpop.permute.xlu0 %750
        %v753 = vsel %vm417, %v749, 0
        %v756 = vsel %vm417, %v751, 0
        %758 = vmatprep.subr.bf16.mxu0 0
        %759 = vmatpush1.bf16.xpose.msra.mxu0 0
        %760 = vmatprep.subr.bf16.mxu0 0
        %761 = vmatpush1.bf16.xpose.msra.mxu0 0
        %762 = vmatprep.subr.bf16.mxu0 0
        %763 = vmatpush1.bf16.xpose.msra.mxu0 0
        %764 = vmatprep.subr.bf16.mxu0 0
        %765 = vmatpush1.bf16.xpose.msra.mxu0 0
        %766 = vmatprep.subr.bf16.mxu0 0
        %767 = vmatpush1.bf16.xpose.msra.mxu0 0
        %768 = vmatprep.subr.bf16.mxu0 0
        %769 = vmatpush1.bf16.xpose.msra.mxu0 0
        %770 = vmatprep.subr.bf16.mxu0 0
        %771 = vmatpush1.bf16.xpose.msra.mxu0 0
        %772 = vmatprep.subr.bf16.mxu0 0
        %773 = vmatpush1.bf16.xpose.msra.mxu0 %v756
        %774 = vmatprep.subr.bf16.mxu0 0
        %775 = vmatpush2.bf16.xpose.msra.mxu0 0
        %776 = vmatprep.subr.bf16.mxu0 0
        %777 = vmatpush2.bf16.xpose.msra.mxu0 0
        %778 = vmatprep.subr.bf16.mxu0 0
        %779 = vmatpush2.bf16.xpose.msra.mxu0 0
        %780 = vmatprep.subr.bf16.mxu0 0
        %781 = vmatpush2.bf16.xpose.msra.mxu0 0
        %782 = vmatprep.subr.bf16.mxu0 0
        %783 = vmatpush2.bf16.xpose.msra.mxu0 0
        %784 = vmatprep.subr.bf16.mxu0 0
        %785 = vmatpush2.bf16.xpose.msra.mxu0 0
        %786 = vmatprep.subr.bf16.mxu0 0
        %787 = vmatpush2.bf16.xpose.msra.mxu0 0
        %788 = vmatprep.subr.bf16.mxu0 0
        %789 = vmatpush2.bf16.xpose.msra.mxu0 0
        %790 = vmatprep.mubr.bf16.mxu0 0
        %791 = vmatmul.mubr.bf16.gmra.mxu0 %v753
        %v792 = vpop.f32.mrf.mxu0
        %v793 = vadd.f32 0.0, %v792
        %v794 = vpop.f32.mrf.mxu0
        %v795 = vpop.f32.mrf.mxu0
        %v796 = vpop.f32.mrf.mxu0
        %797 = vdwg.mxu0
        %v798 = vsel %vm417, %v793, -inf
        %799 = vmax.xlane.f32.xlu0 %v798
        %v800 = vpop.xlane.xlu0 %799
        %v801 = vsub.f32 %v793, %v800
        %v802 = vmul.f32 %v801, 1.442695
        %v803 = vpow.pop %v802
        %v804 = vsel %vm417, %v803, 0.0
        %805 = vadd.xlane.f32.xlu0 %v804
        %v806 = vpop.xlane.xlu0 %805
        %v807 = vrcp.pop %v806
        %v808 = vmul.f32 %v803, %v807
        %v809 = vpack.c.bf16 %v808, %v808
        %810 = vrot.lane.b32.xlu0 %v413, 40
        %v811 = vpop.permute.xlu0 %810
        %v813 = vsel %vm417, %v809, 0
        %v816 = vsel %vm481, %v811, 0
        %818 = vmatprep.subr.bf16.mxu0 0
        %819 = vmatpush1.bf16.msra.mxu0 0
        %820 = vmatprep.subr.bf16.mxu0 0
        %821 = vmatpush1.bf16.msra.mxu0 0
        %822 = vmatprep.subr.bf16.mxu0 0
        %823 = vmatpush1.bf16.msra.mxu0 0
        %824 = vmatprep.subr.bf16.mxu0 0
        %825 = vmatpush1.bf16.msra.mxu0 0
        %826 = vmatprep.subr.bf16.mxu0 0
        %827 = vmatpush1.bf16.msra.mxu0 0
        %828 = vmatprep.subr.bf16.mxu0 0
        %829 = vmatpush1.bf16.msra.mxu0 0
        %830 = vmatprep.subr.bf16.mxu0 0
        %831 = vmatpush1.bf16.msra.mxu0 0
        %832 = vmatprep.subr.bf16.mxu0 0
        %833 = vmatpush1.bf16.msra.mxu0 %v816
        %834 = vmatprep.subr.bf16.mxu0 0
        %835 = vmatpush2.bf16.msra.mxu0 0
        %836 = vmatprep.subr.bf16.mxu0 0
        %837 = vmatpush2.bf16.msra.mxu0 0
        %838 = vmatprep.subr.bf16.mxu0 0
        %839 = vmatpush2.bf16.msra.mxu0 0
        %840 = vmatprep.subr.bf16.mxu0 0
        %841 = vmatpush2.bf16.msra.mxu0 0
        %842 = vmatprep.subr.bf16.mxu0 0
        %843 = vmatpush2.bf16.msra.mxu0 0
        %844 = vmatprep.subr.bf16.mxu0 0
        %845 = vmatpush2.bf16.msra.mxu0 0
        %846 = vmatprep.subr.bf16.mxu0 0
        %847 = vmatpush2.bf16.msra.mxu0 0
        %848 = vmatprep.subr.bf16.mxu0 0
        %849 = vmatpush2.bf16.msra.mxu0 0
        %850 = vmatprep.mubr.bf16.mxu0 0
        %851 = vmatmul.mubr.bf16.gmra.mxu0 %v813
        %v852 = vpop.f32.mrf.mxu0
        %v853 = vadd.f32 0.0, %v852
        %v854 = vpop.f32.mrf.mxu0
        %v855 = vpop.f32.mrf.mxu0
        %v856 = vpop.f32.mrf.mxu0
        %857 = vdwg.mxu0
        %v858 = vpack.c.bf16 %v853, %v853
        %860 = vrot.lane.b32.xlu0 %v636, 8
        %v861 = vpop.permute.xlu0 %860
        %863 = vrot.lane.b32.xlu0 %v747, 16
        %v864 = vpop.permute.xlu0 %863
        %866 = vrot.lane.b32.xlu0 %v858, 24
        %v867 = vpop.permute.xlu0 %866
        %v870 = vsel %vm417, %v525, %v861
        %vm871 = vcmask 130048
        %v873 = vsel %vm871, %v870, %v864
        %vm874 = vcmask 195584
        %v876 = vsel %vm874, %v873, %v867
        %v877 = vld [vmem:[%s3] sm:$0xf]
        %v878 = vld [vmem:[%s3 + $0x4] sm:$0xf]
        %v879 = vld [vmem:[%s3 + $0x8] sm:$0xf]
        %v880 = vld [vmem:[%s3 + $0xc] sm:$0xf]
        %v881 = vld [vmem:[%s4] sm:$0x1]
        %v883 = vlaneseq
        %v884 = vshrl.u32 %v883, 7
        %v885 = vsub.s32 0, %v884
        %v886 = vrot.slane %v881, %v885
        %v892 = vunpack.c.l.b16 %v877
        %v893 = vunpack.c.l.b16 %v878
        %v894 = vunpack.c.l.b16 %v879
        %v895 = vunpack.c.l.b16 %v880
        %v896 = vpack.c.b16 %v893, %v892
        %v897 = vpack.c.b16 %v895, %v894
        %v900 = vsel %vm369, %v876, 0
        %902 = vmatprep.subr.bf16.mxu0 0
        %903 = vmatpush1.bf16.msra.mxu0 0
        %904 = vmatprep.subr.bf16.mxu0 0
        %905 = vmatpush1.bf16.msra.mxu0 0
        %906 = vmatprep.subr.bf16.mxu0 0
        %907 = vmatpush1.bf16.msra.mxu0 0
        %908 = vmatprep.subr.bf16.mxu0 0
        %909 = vmatpush1.bf16.msra.mxu0 0
        %910 = vmatprep.subr.bf16.mxu0 0
        %911 = vmatpush1.bf16.msra.mxu0 0
        %912 = vmatprep.subr.bf16.mxu0 0
        %913 = vmatpush1.bf16.msra.mxu0 0
        %914 = vmatprep.subr.bf16.mxu0 0
        %915 = vmatpush1.bf16.msra.mxu0 %v897
        %916 = vmatprep.subr.bf16.mxu0 0
        %917 = vmatpush1.bf16.msra.mxu0 %v896
        %918 = vmatprep.subr.bf16.mxu0 0
        %919 = vmatpush2.bf16.msra.mxu0 0
        %920 = vmatprep.subr.bf16.mxu0 0
        %921 = vmatpush2.bf16.msra.mxu0 0
        %922 = vmatprep.subr.bf16.mxu0 0
        %923 = vmatpush2.bf16.msra.mxu0 0
        %924 = vmatprep.subr.bf16.mxu0 0
        %925 = vmatpush2.bf16.msra.mxu0 0
        %926 = vmatprep.subr.bf16.mxu0 0
        %927 = vmatpush2.bf16.msra.mxu0 0
        %928 = vmatprep.subr.bf16.mxu0 0
        %929 = vmatpush2.bf16.msra.mxu0 0
        %930 = vmatprep.subr.bf16.mxu0 0
        %931 = vmatpush2.bf16.msra.mxu0 0
        %932 = vmatprep.subr.bf16.mxu0 0
        %933 = vmatpush2.bf16.msra.mxu0 0
        %934 = vmatprep.mubr.bf16.mxu0 0
        %935 = vmatmul.mubr.bf16.gmra.mxu0 %v900
        %v936 = vpop.f32.mrf.mxu0
        %v937 = vadd.f32 %v886, %v936
        %v938 = vpop.f32.mrf.mxu0
        %v939 = vpop.f32.mrf.mxu0
        %v940 = vpop.f32.mrf.mxu0
        %941 = vdwg.mxu0
        %v942 = vadd.f32 %v344, %v937
        %v943 = vpack.c.bf16 %v942, %v942
        %v944 = vld [vmem:[#allocation2] sm:$0xf]
        %v945 = vld [vmem:[#allocation2 + $0x4] sm:$0xf]
        %v946 = vld [vmem:[#allocation2 + $0x8] sm:$0xf]
        %v947 = vld [vmem:[#allocation2 + $0xc] sm:$0xf]
        %v948 = vld [vmem:[%s6] sm:$0x1]
        %v950 = vlaneseq
        %v951 = vshrl.u32 %v950, 7
        %v952 = vsub.s32 0, %v951
        %v953 = vrot.slane %v948, %v952
        %v959 = vunpack.c.l.b16 %v944
        %v960 = vunpack.c.l.b16 %v945
        %v961 = vunpack.c.l.b16 %v946
        %v962 = vunpack.c.l.b16 %v947
        %v963 = vpack.c.b16 %v960, %v959
        %v964 = vpack.c.b16 %v962, %v961
        %v968 = vsel %vm369, %v943, 0
        %970 = vmatprep.subr.bf16.mxu0 0
        %971 = vmatpush1.bf16.msra.mxu0 0
        %972 = vmatprep.subr.bf16.mxu0 0
        %973 = vmatpush1.bf16.msra.mxu0 0
        %974 = vmatprep.subr.bf16.mxu0 0
        %975 = vmatpush1.bf16.msra.mxu0 0
        %976 = vmatprep.subr.bf16.mxu0 0
        %977 = vmatpush1.bf16.msra.mxu0 0
        %978 = vmatprep.subr.bf16.mxu0 0
        %979 = vmatpush1.bf16.msra.mxu0 0
        %980 = vmatprep.subr.bf16.mxu0 0
        %981 = vmatpush1.bf16.msra.mxu0 0
        %982 = vmatprep.subr.bf16.mxu0 0
        %983 = vmatpush1.bf16.msra.mxu0 %v964
        %984 = vmatprep.subr.bf16.mxu0 0
        %985 = vmatpush1.bf16.msra.mxu0 %v963
        %986 = vmatprep.subr.bf16.mxu0 0
        %987 = vmatpush2.bf16.msra.mxu0 0
        %988 = vmatprep.subr.bf16.mxu0 0
        %989 = vmatpush2.bf16.msra.mxu0 0
        %990 = vmatprep.subr.bf16.mxu0 0
        %991 = vmatpush2.bf16.msra.mxu0 0
        %992 = vmatprep.subr.bf16.mxu0 0
        %993 = vmatpush2.bf16.msra.mxu0 0
        %994 = vmatprep.subr.bf16.mxu0 0
        %995 = vmatpush2.bf16.msra.mxu0 0
        %996 = vmatprep.subr.bf16.mxu0 0
        %997 = vmatpush2.bf16.msra.mxu0 0
        %998 = vmatprep.subr.bf16.mxu0 0
        %999 = vmatpush2.bf16.msra.mxu0 0
        %1000 = vmatprep.subr.bf16.mxu0 0
        %1001 = vmatpush2.bf16.msra.mxu0 0
        %1002 = vmatprep.mubr.bf16.mxu0 0
        %1003 = vmatmul.mubr.bf16.gmra.mxu0 %v968
        %v1004 = vpop.f32.mrf.mxu0
        %v1005 = vadd.f32 %v953, %v1004
        %v1006 = vpop.f32.mrf.mxu0
        %v1007 = vpop.f32.mrf.mxu0
        %v1008 = vpop.f32.mrf.mxu0
        %1009 = vdwg.mxu0
        %v1010 = vmax.f32 %v1005, 0.0
        %v1011 = vpack.c.bf16 %v1010, %v1010
        %v1012 = vld [vmem:[%s7] sm:$0xf]
        %v1013 = vld [vmem:[%s7 + $0x4] sm:$0xf]
        %v1014 = vld [vmem:[%s7 + $0x8] sm:$0xf]
        %v1015 = vld [vmem:[%s7 + $0xc] sm:$0xf]
        %v1016 = vld [vmem:[%s7 + $0x10] sm:$0xf]
        %v1017 = vld [vmem:[%s7 + $0x14] sm:$0xf]
        %v1018 = vld [vmem:[%s7 + $0x18] sm:$0xf]
        %v1019 = vld [vmem:[%s7 + $0x1c] sm:$0xf]
        %v1020 = vld [vmem:[%s8] sm:$0x1]
        %v1022 = vlaneseq
        %v1023 = vshrl.u32 %v1022, 7
        %v1024 = vsub.s32 0, %v1023
        %v1025 = vrot.slane %v1020, %v1024
        %v1035 = vunpack.c.l.b16 %v1012
        %v1036 = vunpack.c.l.b16 %v1013
        %v1037 = vunpack.c.l.b16 %v1014
        %v1038 = vunpack.c.l.b16 %v1015
        %v1039 = vunpack.c.l.b16 %v1016
        %v1040 = vunpack.c.l.b16 %v1017
        %v1041 = vunpack.c.l.b16 %v1018
        %v1042 = vunpack.c.l.b16 %v1019
        %v1043 = vpack.c.b16 %v1036, %v1035
        %v1044 = vpack.c.b16 %v1038, %v1037
        %v1045 = vpack.c.b16 %v1040, %v1039
        %v1046 = vpack.c.b16 %v1042, %v1041
        %vm1051 = vcmask 523264
        %v1053 = vsel %vm1051, %v1011, 0
        %1055 = vmatprep.subr.bf16.mxu0 0
        %1056 = vmatpush1.bf16.msra.mxu0 0
        %1057 = vmatprep.subr.bf16.mxu0 0
        %1058 = vmatpush1.bf16.msra.mxu0 0
        %1059 = vmatprep.subr.bf16.mxu0 0
        %1060 = vmatpush1.bf16.msra.mxu0 0
        %1061 = vmatprep.subr.bf16.mxu0 0
        %1062 = vmatpush1.bf16.msra.mxu0 0
        %1063 = vmatprep.subr.bf16.mxu0 0
        %1064 = vmatpush1.bf16.msra.mxu0 %v1046
        %1065 = vmatprep.subr.bf16.mxu0 0
        %1066 = vmatpush1.bf16.msra.mxu0 %v1045
        %1067 = vmatprep.subr.bf16.mxu0 0
        %1068 = vmatpush1.bf16.msra.mxu0 %v1044
        %1069 = vmatprep.subr.bf16.mxu0 0
        %1070 = vmatpush1.bf16.msra.mxu0 %v1043
        %1071 = vmatprep.subr.bf16.mxu0 0
        %1072 = vmatpush2.bf16.msra.mxu0 0
        %1073 = vmatprep.subr.bf16.mxu0 0
        %1074 = vmatpush2.bf16.msra.mxu0 0
        %1075 = vmatprep.subr.bf16.mxu0 0
        %1076 = vmatpush2.bf16.msra.mxu0 0
        %1077 = vmatprep.subr.bf16.mxu0 0
        %1078 = vmatpush2.bf16.msra.mxu0 0
        %1079 = vmatprep.subr.bf16.mxu0 0
        %1080 = vmatpush2.bf16.msra.mxu0 0
        %1081 = vmatprep.subr.bf16.mxu0 0
        %1082 = vmatpush2.bf16.msra.mxu0 0
        %1083 = vmatprep.subr.bf16.mxu0 0
        %1084 = vmatpush2.bf16.msra.mxu0 0
        %1085 = vmatprep.subr.bf16.mxu0 0
        %1086 = vmatpush2.bf16.msra.mxu0 0
        %1087 = vmatprep.mubr.bf16.mxu0 0
        %1088 = vmatmul.mubr.bf16.gmra.mxu0 %v1053
        %v1089 = vpop.f32.mrf.mxu0
        %v1090 = vadd.f32 %v1025, %v1089
        %v1091 = vpop.f32.mrf.mxu0
        %v1092 = vpop.f32.mrf.mxu0
        %v1093 = vpop.f32.mrf.mxu0
        %1094 = vdwg.mxu0
        %v1095 = vadd.f32 %v942, %v1090
        %1096 = vst.msk [vmem:[%s338] sm:$0xff] %vm369, %v1095
        %s1097 = sand.u32 %s226, 1
        %s1098 = scalar_lea.sflag [#allocation4], %s1097
        %s1099 = sand.u32 %s226, 1
        %s1100 = smul.addr %s1099, 8
        %s1101 = scalar_lea.vmem [#allocation5], %s1100
        // Predicated region
        $region61: #{tpu_custom_call.1} parent=55 // pred_check
          %p1102 = pneg %p236
        $region62: #{tpu_custom_call.1} parent=55 // pred_check_branch
          %1104 = sbr.rel (%p1102) target = $region64
        $region63: #{tpu_custom_call.1} parent=55 // pred_region
          %s1106 = ssub.s32 128, 128
          %1107 = vsyncadd %s1098, %s1106
          %s1108 = smul.addr %s24, 128
          %s1109 = scalar_lea.hbm %s9, %s1108
          %s1111 = sshll.u32 %s1101, 4
          %s1112 = int_to_ptr.vmem [resolvable:$true] %s1111
          %1114 = dma.vmem_to_hbm [thread:$0]  %s1112, 128, %s1109, %s1098
        $region64: #{tpu_custom_call.1} parent=55 // pred_fallthru
          _
      $region56: #{tpu_custom_call.1} parent=5 // pred_fallthru
        _
      %p1115 = scmp.le.s32.totalorder 2, %s19
      // Predicated region
      $region65: #{tpu_custom_call.1} parent=5 // pred_check
        %p1116 = pneg %p1115
      $region66: #{tpu_custom_call.1} parent=5 // pred_check_branch
        %1118 = sbr.rel (%p1116) target = $region68
      $region67: #{tpu_custom_call.1} parent=5 // pred_region
        %s1119 = ssub.s32 %s19, 2
        // Predicated region
        $region69: #{tpu_custom_call.1} parent=67 // pred_check
          %p1120 = pneg %p242
        $region70: #{tpu_custom_call.1} parent=67 // pred_check_branch
          %1122 = sbr.rel (%p1120) target = $region72
        $region71: #{tpu_custom_call.1} parent=67 // pred_region
          %s1123 = sand.u32 %s227, 1
          %s1124 = scalar_lea.sflag [#allocation4], %s1123
          %s1125 = sand.u32 %s227, 1
          %s1126 = smul.addr %s1125, 8
          %s1127 = scalar_lea.vmem [#allocation5], %s1126
          %1128 = dma.done %s1124, 128
        $region72: #{tpu_custom_call.1} parent=67 // pred_fallthru
          _
      $region68: #{tpu_custom_call.1} parent=5 // pred_fallthru
        _
    $region6: #{tpu_custom_call.1} parent=1 // loop_footer
      %s23 = sadd.s32 1, %s19
    $region7: #{tpu_custom_call.1} parent=1 // loop_footer_branch
      %18 = sbr.rel target = $region3
    $region8: #{tpu_custom_call.1} parent=1 // loop_exit
      _
    %1129 = vsyncpa [#allocation3], 1
    %s1130 = scalar_lea.sflag [#allocation3], 1
    %1131 = vsyncpa %s1130, 1
    %1132 = vsyncpa [#allocation4], 1
    %s1133 = scalar_lea.sflag [#allocation4], 1
    %1134 = vsyncpa %s1133, 1

// kernel: tpu_custom_call.1
$region0: #{tpu_custom_call.1}
  #allocation0 [shape = 'u32[]', space=smem, size = 0x4, offset = 0x4, fixed_abs, tag = 'smem constant byte address 0x4 - core index']
  #allocation1 [shape = 'u32[144,128]{1,0:T(1,128)}', space=vmem, size = 0x12000, scoped, tag = 'internal scratch']
  %s0 = inlined_call_operand.vmem [shape: f32[2,8,32], index: 0, kind: input, shape index: {}]
  %s1 = inlined_call_operand.vmem [shape: bf16[32,96], index: 1, kind: input, shape index: {}]
  %s2 = inlined_call_operand.vmem [shape: f32[1,96], index: 2, kind: input, shape index: {}]
  %s3 = inlined_call_operand.vmem [shape: bf16[32,32], index: 3, kind: input, shape index: {}]
  %s4 = inlined_call_operand.vmem [shape: f32[1,32], index: 4, kind: input, shape index: {}]
  %s5 = inlined_call_operand.hbm [shape: bf16[32,64], index: 5, kind: input, shape index: {}]
  %s6 = inlined_call_operand.vmem [shape: f32[1,64], index: 6, kind: input, shape index: {}]
  %s7 = inlined_call_operand.vmem [shape: bf16[64,32], index: 7, kind: input, shape index: {}]
  %s8 = inlined_call_operand.vmem [shape: f32[1,32], index: 8, kind: input, shape index: {}]
  %s9 = inlined_call_operand.hbm [shape: f32[2,8,32], index: 9, kind: output, shape index: {}]
  %s10 = sld [smem:[#allocation0]]
  $region73: #{tpu_custom_call.1} parent=0
    _
  %s12 = ssub.s32 1, %s10
  %s13 = scalar_select 0, %s12, %s10
  $region1: #{tpu_custom_call.1} parent=0
    #allocation2 [shape = 'u8[8192]{0}', space=vmem, size = 0x2000, scoped, tag = 'input window, operand 5, single buffered']
    #allocation3 [shape = 's32[2]{0}', space=sflag, size = 0x8, scoped, tag = 'scoped memory for tpu_custom_call.1']
    #allocation4 [shape = 's32[2]{0}', space=sflag, size = 0x8, scoped, tag = 'scoped memory for tpu_custom_call.1']
    #allocation5 [shape = 'u8[8192]{0}', space=vmem, size = 0x2000, scoped, tag = 'output window, operand 0']
    %14 = vsyncpa [#allocation3], 0
    %15 = vsyncpa [#allocation4], 0
    %s16 = scalar_lea.sflag [#allocation4], 1
    %17 = vsyncpa %s16, 0
    loop: start=0, step=1, limit=4
    $region2: #{tpu_custom_call.1} parent=1 // loop_pre_header
      _
    $region3: #{tpu_custom_call.1} parent=1 // loop_header
      %s19 = sphi 0, %s23
      %p20 = scmp.ge.s32.totalorder %s19, 4
      %s29 = sphi 0, %s31
      %s32 = sphi 0, %s29
      %s33 = sphi 0, %s32
      %s49 = sphi 0, %s33
      %s53 = sphi 0, %s53
      %s55 = sphi 0, %s53
      %s56 = sphi 0, %s55
      %s70 = sphi 0, %s56
      %s74 = sphi 0, %s74
      %s76 = sphi 0, %s74
      %s77 = sphi 0, %s76
      %s91 = sphi 0, %s77
      %s95 = sphi 0, %s95
      %s97 = sphi 0, %s95
      %s98 = sphi 0, %s97
      %s112 = sphi 0, %s98
      %s116 = sphi 0, %s116
      %s118 = sphi 0, %s116
      %s119 = sphi 0, %s118
      %s133 = sphi 0, %s119
      %s137 = sphi 0, %s137
      %s139 = sphi 0, %s137
      %s140 = sphi 0, %s139
      %s154 = sphi 0, %s140
      %s158 = sphi 0, %s158
      %s160 = sphi 0, %s158
      %s161 = sphi 0, %s160
      %s175 = sphi 0, %s161
      %s179 = sphi 0, %s179
      %s181 = sphi 0, %s179
      %s182 = sphi 0, %s181
      %s196 = sphi 0, %s182
      %s200 = sphi 0, %s200
      %s202 = sphi 0, %s200
      %s203 = sphi 0, %s202
      %s217 = sphi 0, %s203
      %s223 = sphi 0, %s225
      %s226 = sphi 0, %s223
      %s227 = sphi 0, %s226
      %s243 = sphi 0, %s227
    $region4: #{tpu_custom_call.1} parent=1 // loop_header_branch
      %22 = sbr.rel (%p20) target = $region8
    $region5: #{tpu_custom_call.1} parent=1 // loop_body
      %s24 = ssub.s32 %s19, 1
      %s25 = ssub.s32 %s19, 2
      %s26 = sadd.s32 %s19, 1
      %s27 = ssub.s32 %s19, %s26
      %p28 = scmp.eq.s32.totalorder %s27, 0
      %s30 = sadd.s32 %s29, 1
      %s31 = scalar_select %p28, %s29, %s30
      %p34 = pneg %p28
      %p35 = scmp.eq.s32.totalorder %s19, 1
      %p36 = por %p34, %p35
      %p37 = scmp.ne.s32.totalorder %s29, %s32
      %p38 = scmp.eq.s32.totalorder %s19, 0
      %p39 = por %p37, %p38
      %p40 = scmp.ne.s32.totalorder %s29, %s32
      %p41 = scmp.eq.s32.totalorder %s24, 1
      %p42 = por %p40, %p41
      %p43 = scmp.ne.s32.totalorder %s32, %s33
      %p44 = scmp.eq.s32.totalorder %s24, 0
      %p45 = por %p43, %p44
      %p46 = scmp.ne.s32.totalorder %s32, %s33
      %p47 = scmp.eq.s32.totalorder %s25, 1
      %p48 = por %p46, %p47
      %p50 = scmp.ne.s32.totalorder %s33, %s49
      %p51 = scmp.eq.s32.totalorder %s25, 0
      %p52 = por %p50, %p51
      %s54 = sadd.s32 %s53, 1
      %p57 = scmp.eq.s32.totalorder %s19, 1
      %p58 = scmp.ne.s32.totalorder %s53, %s55
      %p59 = scmp.eq.s32.totalorder %s19, 0
      %p60 = por %p58, %p59
      %p61 = scmp.ne.s32.totalorder %s53, %s55
      %p62 = scmp.eq.s32.totalorder %s24, 1
      %p63 = por %p61, %p62
      %p64 = scmp.ne.s32.totalorder %s55, %s56
      %p65 = scmp.eq.s32.totalorder %s24, 0
      %p66 = por %p64, %p65
      %p67 = scmp.ne.s32.totalorder %s55, %s56
      %p68 = scmp.eq.s32.totalorder %s25, 1
      %p69 = por %p67, %p68
      %p71 = scmp.ne.s32.totalorder %s56, %s70
      %p72 = scmp.eq.s32.totalorder %s25, 0
      %p73 = por %p71, %p72
      %s75 = sadd.s32 %s74, 1
      %p78 = scmp.eq.s32.totalorder %s19, 1
      %p79 = scmp.ne.s32.totalorder %s74, %s76
      %p80 = scmp.eq.s32.totalorder %s19, 0
      %p81 = por %p79, %p80
      %p82 = scmp.ne.s32.totalorder %s74, %s76
      %p83 = scmp.eq.s32.totalorder %s24, 1
      %p84 = por %p82, %p83
      %p85 = scmp.ne.s32.totalorder %s76, %s77
      %p86 = scmp.eq.s32.totalorder %s24, 0
      %p87 = por %p85, %p86
      %p88 = scmp.ne.s32.totalorder %s76, %s77
      %p89 = scmp.eq.s32.totalorder %s25, 1
      %p90 = por %p88, %p89
      %p92 = scmp.ne.s32.totalorder %s77, %s91
      %p93 = scmp.eq.s32.totalorder %s25, 0
      %p94 = por %p92, %p93
      %s96 = sadd.s32 %s95, 1
      %p99 = scmp.eq.s32.totalorder %s19, 1
      %p100 = scmp.ne.s32.totalorder %s95, %s97
      %p101 = scmp.eq.s32.totalorder %s19, 0
      %p102 = por %p100, %p101
      %p103 = scmp.ne.s32.totalorder %s95, %s97
      %p104 = scmp.eq.s32.totalorder %s24, 1
      %p105 = por %p103, %p104
      %p106 = scmp.ne.s32.totalorder %s97, %s98
      %p107 = scmp.eq.s32.totalorder %s24, 0
      %p108 = por %p106, %p107
      %p109 = scmp.ne.s32.totalorder %s97, %s98
      %p110 = scmp.eq.s32.totalorder %s25, 1
      %p111 = por %p109, %p110
      %p113 = scmp.ne.s32.totalorder %s98, %s112
      %p114 = scmp.eq.s32.totalorder %s25, 0
      %p115 = por %p113, %p114
      %s117 = sadd.s32 %s116, 1
      %p120 = scmp.eq.s32.totalorder %s19, 1
      %p121 = scmp.ne.s32.totalorder %s116, %s118
      %p122 = scmp.eq.s32.totalorder %s19, 0
      %p123 = por %p121, %p122
      %p124 = scmp.ne.s32.totalorder %s116, %s118
      %p125 = scmp.eq.s32.totalorder %s24, 1
      %p126 = por %p124, %p125
      %p127 = scmp.ne.s32.totalorder %s118, %s119
      %p128 = scmp.eq.s32.totalorder %s24, 0
      %p129 = por %p127, %p128
      %p130 = scmp.ne.s32.totalorder %s118, %s119
      %p131 = scmp.eq.s32.totalorder %s25, 1
      %p132 = por %p130, %p131
      %p134 = scmp.ne.s32.totalorder %s119, %s133
      %p135 = scmp.eq.s32.totalorder %s25, 0
      %p136 = por %p134, %p135
      %s138 = sadd.s32 %s137, 1
      %p141 = scmp.eq.s32.totalorder %s19, 1
      %p142 = scmp.ne.s32.totalorder %s137, %s139
      %p143 = scmp.eq.s32.totalorder %s19, 0
      %p144 = por %p142, %p143
      %p145 = scmp.ne.s32.totalorder %s137, %s139
      %p146 = scmp.eq.s32.totalorder %s24, 1
      %p147 = por %p145, %p146
      %p148 = scmp.ne.s32.totalorder %s139, %s140
      %p149 = scmp.eq.s32.totalorder %s24, 0
      %p150 = por %p148, %p149
      %p151 = scmp.ne.s32.totalorder %s139, %s140
      %p152 = scmp.eq.s32.totalorder %s25, 1
      %p153 = por %p151, %p152
      %p155 = scmp.ne.s32.totalorder %s140, %s154
      %p156 = scmp.eq.s32.totalorder %s25, 0
      %p157 = por %p155, %p156
      %s159 = sadd.s32 %s158, 1
      %p162 = scmp.eq.s32.totalorder %s19, 1
      %p163 = scmp.ne.s32.totalorder %s158, %s160
      %p164 = scmp.eq.s32.totalorder %s19, 0
      %p165 = por %p163, %p164
      %p166 = scmp.ne.s32.totalorder %s158, %s160
      %p167 = scmp.eq.s32.totalorder %s24, 1
      %p168 = por %p166, %p167
      %p169 = scmp.ne.s32.totalorder %s160, %s161
      %p170 = scmp.eq.s32.totalorder %s24, 0
      %p171 = por %p169, %p170
      %p172 = scmp.ne.s32.totalorder %s160, %s161
      %p173 = scmp.eq.s32.totalorder %s25, 1
      %p174 = por %p172, %p173
      %p176 = scmp.ne.s32.totalorder %s161, %s175
      %p177 = scmp.eq.s32.totalorder %s25, 0
      %p178 = por %p176, %p177
      %s180 = sadd.s32 %s179, 1
      %p183 = scmp.eq.s32.totalorder %s19, 1
      %p184 = scmp.ne.s32.totalorder %s179, %s181
      %p185 = scmp.eq.s32.totalorder %s19, 0
      %p186 = por %p184, %p185
      %p187 = scmp.ne.s32.totalorder %s179, %s181
      %p188 = scmp.eq.s32.totalorder %s24, 1
      %p189 = por %p187, %p188
      %p190 = scmp.ne.s32.totalorder %s181, %s182
      %p191 = scmp.eq.s32.totalorder %s24, 0
      %p192 = por %p190, %p191
      %p193 = scmp.ne.s32.totalorder %s181, %s182
      %p194 = scmp.eq.s32.totalorder %s25, 1
      %p195 = por %p193, %p194
      %p197 = scmp.ne.s32.totalorder %s182, %s196
      %p198 = scmp.eq.s32.totalorder %s25, 0
      %p199 = por %p197, %p198
      %s201 = sadd.s32 %s200, 1
      %p204 = scmp.eq.s32.totalorder %s19, 1
      %p205 = scmp.ne.s32.totalorder %s200, %s202
      %p206 = scmp.eq.s32.totalorder %s19, 0
      %p207 = por %p205, %p206
      %p208 = scmp.ne.s32.totalorder %s200, %s202
      %p209 = scmp.eq.s32.totalorder %s24, 1
      %p210 = por %p208, %p209
      %p211 = scmp.ne.s32.totalorder %s202, %s203
      %p212 = scmp.eq.s32.totalorder %s24, 0
      %p213 = por %p211, %p212
      %p214 = scmp.ne.s32.totalorder %s202, %s203
      %p215 = scmp.eq.s32.totalorder %s25, 1
      %p216 = por %p214, %p215
      %p218 = scmp.ne.s32.totalorder %s203, %s217
      %p219 = scmp.eq.s32.totalorder %s25, 0
      %p220 = por %p218, %p219
      %s221 = ssub.s32 %s19, %s26
      %p222 = scmp.eq.s32.totalorder %s221, 0
      %s224 = sadd.s32 %s223, 1
      %s225 = scalar_select %p222, %s223, %s224
      %p228 = pneg %p222
      %p229 = scmp.eq.s32.totalorder %s19, 1
      %p230 = por %p228, %p229
      %p231 = scmp.ne.s32.totalorder %s223, %s226
      %p232 = scmp.eq.s32.totalorder %s19, 0
      %p233 = por %p231, %p232
      %p234 = scmp.ne.s32.totalorder %s223, %s226
      %p235 = scmp.eq.s32.totalorder %s24, 1
      %p236 = por %p234, %p235
      %p237 = scmp.ne.s32.totalorder %s226, %s227
      %p238 = scmp.eq.s32.totalorder %s24, 0
      %p239 = por %p237, %p238
      %p240 = scmp.ne.s32.totalorder %s226, %s227
      %p241 = scmp.eq.s32.totalorder %s25, 1
      %p242 = por %p240, %p241
      %p244 = scmp.ne.s32.totalorder %s227, %s243
      %p245 = scmp.eq.s32.totalorder %s25, 0
      %p246 = por %p244, %p245
      %p247 = scmp.le.s32.totalorder 1, %s19
      %p248 = scmp.lt.s32.totalorder %s19, 3
      %p249 = pnand %p247, %p248
      %p250 = pneg %p249
      // Predicated region
      $region9: #{tpu_custom_call.1} parent=5 // pred_check
        _
      $region10: #{tpu_custom_call.1} parent=5 // pred_check_branch
        %252 = sbr.rel (%p249) target = $region12
      $region11: #{tpu_custom_call.1} parent=5 // pred_region
        %s253 = ssub.s32 %s19, 1
        // Predicated region
        $region13: #{tpu_custom_call.1} parent=11 // pred_check
          %p254 = pneg %p66
        $region14: #{tpu_custom_call.1} parent=11 // pred_check_branch
          %256 = sbr.rel (%p254) target = $region16
        $region15: #{tpu_custom_call.1} parent=11 // pred_region
          _
        $region16: #{tpu_custom_call.1} parent=11 // pred_fallthru
          _
        // Predicated region
        $region17: #{tpu_custom_call.1} parent=11 // pred_check
          %p257 = pneg %p87
        $region18: #{tpu_custom_call.1} parent=11 // pred_check_branch
          %259 = sbr.rel (%p257) target = $region20
        $region19: #{tpu_custom_call.1} parent=11 // pred_region
          _
        $region20: #{tpu_custom_call.1} parent=11 // pred_fallthru
          _
        // Predicated region
        $region21: #{tpu_custom_call.1} parent=11 // pred_check
          %p260 = pneg %p108
        $region22: #{tpu_custom_call.1} parent=11 // pred_check_branch
          %262 = sbr.rel (%p260) target = $region24
        $region23: #{tpu_custom_call.1} parent=11 // pred_region
          _
        $region24: #{tpu_custom_call.1} parent=11 // pred_fallthru
          _
        // Predicated region
        $region25: #{tpu_custom_call.1} parent=11 // pred_check
          %p263 = pneg %p129
        $region26: #{tpu_custom_call.1} parent=11 // pred_check_branch
          %265 = sbr.rel (%p263) target = $region28
        $region27: #{tpu_custom_call.1} parent=11 // pred_region
          _
        $region28: #{tpu_custom_call.1} parent=11 // pred_fallthru
          _
        // Predicated region
        $region29: #{tpu_custom_call.1} parent=11 // pred_check
          %p266 = pneg %p150
        $region30: #{tpu_custom_call.1} parent=11 // pred_check_branch
          %268 = sbr.rel (%p266) target = $region32
        $region31: #{tpu_custom_call.1} parent=11 // pred_region
          %s270 = ssub.s32 256, 256
          %271 = vsyncadd [#allocation3], %s270
          %s272 = sshll.u32 [#allocation2], 4
          %s273 = int_to_ptr.vmem [resolvable:$true] %s272
          %278 = dma.hbm_to_vmem [thread:$0]  %s5, 256, %s273, [#allocation3], 64, 64, 4
        $region32: #{tpu_custom_call.1} parent=11 // pred_fallthru
          _
        // Predicated region
        $region33: #{tpu_custom_call.1} parent=11 // pred_check
          %p279 = pneg %p171
        $region34: #{tpu_custom_call.1} parent=11 // pred_check_branch
          %281 = sbr.rel (%p279) target = $region36
        $region35: #{tpu_custom_call.1} parent=11 // pred_region
          _
        $region36: #{tpu_custom_call.1} parent=11 // pred_fallthru
          _
        // Predicated region
        $region37: #{tpu_custom_call.1} parent=11 // pred_check
          %p282 = pneg %p192
        $region38: #{tpu_custom_call.1} parent=11 // pred_check_branch
          %284 = sbr.rel (%p282) target = $region40
        $region39: #{tpu_custom_call.1} parent=11 // pred_region
          _
        $region40: #{tpu_custom_call.1} parent=11 // pred_fallthru
          _
        // Predicated region
        $region41: #{tpu_custom_call.1} parent=11 // pred_check
          %p285 = pneg %p213
        $region42: #{tpu_custom_call.1} parent=11 // pred_check_branch
          %287 = sbr.rel (%p285) target = $region44
        $region43: #{tpu_custom_call.1} parent=11 // pred_region
          _
        $region44: #{tpu_custom_call.1} parent=11 // pred_fallthru
          _
      $region12: #{tpu_custom_call.1} parent=5 // pred_fallthru
        _
      %p288 = scmp.lt.s32.totalorder %s19, 2
      // Predicated region
      $region45: #{tpu_custom_call.1} parent=5 // pred_check
        %p289 = pneg %p288
      $region46: #{tpu_custom_call.1} parent=5 // pred_check_branch
        %291 = sbr.rel (%p289) target = $region48
      $region47: #{tpu_custom_call.1} parent=5 // pred_region
        // Predicated region
        $region49: #{tpu_custom_call.1} parent=47 // pred_check
          %p292 = pneg %p39
        $region50: #{tpu_custom_call.1} parent=47 // pred_check_branch
          %294 = sbr.rel (%p292) target = $region52
        $region51: #{tpu_custom_call.1} parent=47 // pred_region
          %p295 = scmp.lt.s32.totalorder %s19, 1
          %s296 = scalar_select %p295, %s19, 1
          %s297 = smul.addr %s296, 8
          %s298 = scalar_lea.vmem %s0, %s297
        $region52: #{tpu_custom_call.1} parent=47 // pred_fallthru
          _
      $region48: #{tpu_custom_call.1} parent=5 // pred_fallthru
        _
      %p299 = scmp.le.s32.totalorder 1, %s19
      %p300 = scmp.lt.s32.totalorder %s19, 3
      %p301 = pnand %p299, %p300
      %p302 = pneg %p301
      // Predicated region
      $region53: #{tpu_custom_call.1} parent=5 // pred_check
        _
      $region54: #{tpu_custom_call.1} parent=5 // pred_check_branch
        %304 = sbr.rel (%p301) target = $region56
      $region55: #{tpu_custom_call.1} parent=5 // pred_region
        %s305 = ssub.s32 %s19, 1
        // Predicated region
        $region57: #{tpu_custom_call.1} parent=55 // pred_check
          %p306 = pneg %p150
        $region58: #{tpu_custom_call.1} parent=55 // pred_check_branch
          %308 = sbr.rel (%p306) target = $region60
        $region59: #{tpu_custom_call.1} parent=55 // pred_region
          %309 = dma.done [#allocation3], 256
        $region60: #{tpu_custom_call.1} parent=55 // pred_fallthru
          _
        %p310 = scmp.lt.s32.totalorder %s24, 1
        %s311 = scalar_select %p310, %s24, 1
        %s312 = smul.addr %s311, 8
        %s313 = scalar_lea.vmem %s0, %s312
        %p314 = pneg %p45
        %p315 = pneg %p42
        %p316 = pneg %p66
        %p317 = pneg %p63
        %p318 = pneg %p87
        %p319 = pneg %p84
        %p320 = pneg %p108
        %p321 = pneg %p105
        %p322 = pneg %p129
        %p323 = pneg %p126
        %p324 = pneg %p150
        %p325 = pneg %p147
        %p326 = pneg %p171
        %p327 = pneg %p168
        %p328 = pneg %p192
        %p329 = pneg %p189
        %p330 = pneg %p213
        %p331 = pneg %p210
        %p332 = pneg %p239
        %p333 = pneg %p236
        %s334 = sand.u32 %s226, 1
        %s335 = scalar_lea.sflag [#allocation4], %s334
        %s336 = sand.u32 %s226, 1
        %s337 = smul.addr %s336, 8
        %s338 = scalar_lea.vmem [#allocation5], %s337
        %p339 = scmp.lt.s32.totalorder %s24, 1
        %s340 = scalar_select %p339, %s24, 1
        %s341 = smul.addr %s340, 8
        %s342 = scalar_lea.vmem %s0, %s341
        %v344 = vld [vmem:[%s342] sm:$0xff]
        %v345 = vpack.c.bf16 %v344, %v344
        %v346 = vld [vmem:[%s1] sm:$0xf]
        %v347 = vld [vmem:[%s1 + $0x4] sm:$0xf]
        %v348 = vld [vmem:[%s1 + $0x8] sm:$0xf]
        %v349 = vld [vmem:[%s1 + $0xc] sm:$0xf]
        %v350 = vld [vmem:[%s2] sm:$0x1]
        %v352 = vlaneseq
        %v353 = vshrl.u32 %v352, 7
        %v354 = vsub.s32 0, %v353
        %v355 = vrot.slane %v350, %v354
        %v361 = vunpack.c.l.b16 %v346
        %v362 = vunpack.c.l.b16 %v347
        %v363 = vunpack.c.l.b16 %v348
        %v364 = vunpack.c.l.b16 %v349
        %v365 = vpack.c.b16 %v362, %v361
        %v366 = vpack.c.b16 %v364, %v363
        %vm369 = vcmask 261120
        %v371 = vsel %vm369, %v345, 0
        %373 = vmatprep.subr.bf16.mxu0 0
        %374 = vmatpush1.bf16.msra.mxu0 0
        %375 = vmatprep.subr.bf16.mxu0 0
        %376 = vmatpush1.bf16.msra.mxu0 0
        %377 = vmatprep.subr.bf16.mxu0 0
        %378 = vmatpush1.bf16.msra.mxu0 0
        %379 = vmatprep.subr.bf16.mxu0 0
        %380 = vmatpush1.bf16.msra.mxu0 0
        %381 = vmatprep.subr.bf16.mxu0 0
        %382 = vmatpush1.bf16.msra.mxu0 0
        %383 = vmatprep.subr.bf16.mxu0 0
        %384 = vmatpush1.bf16.msra.mxu0 0
        %385 = vmatprep.subr.bf16.mxu0 0
        %386 = vmatpush1.bf16.msra.mxu0 %v366
        %387 = vmatprep.subr.bf16.mxu0 0
        %388 = vmatpush1.bf16.msra.mxu0 %v365
        %389 = vmatprep.subr.bf16.mxu0 0
        %390 = vmatpush2.bf16.msra.mxu0 0
        %391 = vmatprep.subr.bf16.mxu0 0
        %392 = vmatpush2.bf16.msra.mxu0 0
        %393 = vmatprep.subr.bf16.mxu0 0
        %394 = vmatpush2.bf16.msra.mxu0 0
        %395 = vmatprep.subr.bf16.mxu0 0
        %396 = vmatpush2.bf16.msra.mxu0 0
        %397 = vmatprep.subr.bf16.mxu0 0
        %398 = vmatpush2.bf16.msra.mxu0 0
        %399 = vmatprep.subr.bf16.mxu0 0
        %400 = vmatpush2.bf16.msra.mxu0 0
        %401 = vmatprep.subr.bf16.mxu0 0
        %402 = vmatpush2.bf16.msra.mxu0 0
        %403 = vmatprep.subr.bf16.mxu0 0
        %404 = vmatpush2.bf16.msra.mxu0 0
        %405 = vmatprep.mubr.bf16.mxu0 0
        %406 = vmatmul.mubr.bf16.gmra.mxu0 %v371
        %v407 = vpop.f32.mrf.mxu0
        %v408 = vadd.f32 %v355, %v407
        %v409 = vpop.f32.mrf.mxu0
        %v410 = vpop.f32.mrf.mxu0
        %v411 = vpop.f32.mrf.mxu0
        %412 = vdwg.mxu0
        %v413 = vpack.c.bf16 %v408, %v408
        %415 = vrot.lane.b32.xlu0 %v413, 96
        %v416 = vpop.permute.xlu0 %415
        %vm417 = vcmask 64512
        %v419 = vsel %vm417, %v413, 0
        %v422 = vsel %vm417, %v416, 0
        %424 = vmatprep.subr.bf16.mxu0 0
        %425 = vmatpush1.bf16.xpose.msra.mxu0 0
        %426 = vmatprep.subr.bf16.mxu0 0
        %427 = vmatpush1.bf16.xpose.msra.mxu0 0
        %428 = vmatprep.subr.bf16.mxu0 0
        %429 = vmatpush1.bf16.xpose.msra.mxu0 0
        %430 = vmatprep.subr.bf16.mxu0 0
        %431 = vmatpush1.bf16.xpose.msra.mxu0 0
        %432 = vmatprep.subr.bf16.mxu0 0
        %433 = vmatpush1.bf16.xpose.msra.mxu0 0
        %434 = vmatprep.subr.bf16.mxu0 0
        %435 = vmatpush1.bf16.xpose.msra.mxu0 0
        %436 = vmatprep.subr.bf16.mxu0 0
        %437 = vmatpush1.bf16.xpose.msra.mxu0 0
        %438 = vmatprep.subr.bf16.mxu0 0
        %439 = vmatpush1.bf16.xpose.msra.mxu0 %v422
        %440 = vmatprep.subr.bf16.mxu0 0
        %441 = vmatpush2.bf16.xpose.msra.mxu0 0
        %442 = vmatprep.subr.bf16.mxu0 0
        %443 = vmatpush2.bf16.xpose.msra.mxu0 0
        %444 = vmatprep.subr.bf16.mxu0 0
        %445 = vmatpush2.bf16.xpose.msra.mxu0 0
        %446 = vmatprep.subr.bf16.mxu0 0
        %447 = vmatpush2.bf16.xpose.msra.mxu0 0
        %448 = vmatprep.subr.bf16.mxu0 0
        %449 = vmatpush2.bf16.xpose.msra.mxu0 0
        %450 = vmatprep.subr.bf16.mxu0 0
        %451 = vmatpush2.bf16.xpose.msra.mxu0 0
        %452 = vmatprep.subr.bf16.mxu0 0
        %453 = vmatpush2.bf16.xpose.msra.mxu0 0
        %454 = vmatprep.subr.bf16.mxu0 0
        %455 = vmatpush2.bf16.xpose.msra.mxu0 0
        %456 = vmatprep.mubr.bf16.mxu0 0
        %457 = vmatmul.mubr.bf16.gmra.mxu0 %v419
        %v458 = vpop.f32.mrf.mxu0
        %v459 = vadd.f32 0.0, %v458
        %v460 = vpop.f32.mrf.mxu0
        %v461 = vpop.f32.mrf.mxu0
        %v462 = vpop.f32.mrf.mxu0
        %463 = vdwg.mxu0
        %v464 = vsel %vm417, %v459, -inf
        %465 = vmax.xlane.f32.xlu0 %v464
        %v466 = vpop.xlane.xlu0 %465
        %v467 = vsub.f32 %v459, %v466
        %v468 = vmul.f32 %v467, 1.442695
        %v469 = vpow.pop %v468
        %v470 = vsel %vm417, %v469, 0.0
        %471 = vadd.xlane.f32.xlu0 %v470
        %v472 = vpop.xlane.xlu0 %471
        %v473 = vrcp.pop %v472
        %v474 = vmul.f32 %v469, %v473
        %v475 = vpack.c.bf16 %v474, %v474
        %476 = vrot.lane.b32.xlu0 %v413, 64
        %v477 = vpop.permute.xlu0 %476
        %v479 = vsel %vm417, %v475, 0
        %vm481 = vcmask 1043456
        %v483 = vsel %vm481, %v477, 0
        %485 = vmatprep.subr.bf16.mxu0 0
        %486 = vmatpush1.bf16.msra.mxu0 0
        %487 = vmatprep.subr.bf16.mxu0 0
        %488 = vmatpush1.bf16.msra.mxu0 0
        %489 = vmatprep.subr.bf16.mxu0 0
        %490 = vmatpush1.bf16.msra.mxu0 0
        %491 = vmatprep.subr.bf16.mxu0 0
        %492 = vmatpush1.bf16.msra.mxu0 0
        %493 = vmatprep.subr.bf16.mxu0 0
        %494 = vmatpush1.bf16.msra.mxu0 0
        %495 = vmatprep.subr.bf16.mxu0 0
        %496 = vmatpush1.bf16.msra.mxu0 0
        %497 = vmatprep.subr.bf16.mxu0 0
        %498 = vmatpush1.bf16.msra.mxu0 0
        %499 = vmatprep.subr.bf16.mxu0 0
        %500 = vmatpush1.bf16.msra.mxu0 %v483
        %501 = vmatprep.subr.bf16.mxu0 0
        %502 = vmatpush2.bf16.msra.mxu0 0
        %503 = vmatprep.subr.bf16.mxu0 0
        %504 = vmatpush2.bf16.msra.mxu0 0
        %505 = vmatprep.subr.bf16.mxu0 0
        %506 = vmatpush2.bf16.msra.mxu0 0
        %507 = vmatprep.subr.bf16.mxu0 0
        %508 = vmatpush2.bf16.msra.mxu0 0
        %509 = vmatprep.subr.bf16.mxu0 0
        %510 = vmatpush2.bf16.msra.mxu0 0
        %511 = vmatprep.subr.bf16.mxu0 0
        %512 = vmatpush2.bf16.msra.mxu0 0
        %513 = vmatprep.subr.bf16.mxu0 0
        %514 = vmatpush2.bf16.msra.mxu0 0
        %515 = vmatprep.subr.bf16.mxu0 0
        %516 = vmatpush2.bf16.msra.mxu0 0
        %517 = vmatprep.mubr.bf16.mxu0 0
        %518 = vmatmul.mubr.bf16.gmra.mxu0 %v479
        %v519 = vpop.f32.mrf.mxu0
        %v520 = vadd.f32 0.0, %v519
        %v521 = vpop.f32.mrf.mxu0
        %v522 = vpop.f32.mrf.mxu0
        %v523 = vpop.f32.mrf.mxu0
        %524 = vdwg.mxu0
        %v525 = vpack.c.bf16 %v520, %v520
        %526 = vrot.lane.b32.xlu0 %v413, 120
        %v527 = vpop.permute.xlu0 %526
        %528 = vrot.lane.b32.xlu0 %v413, 88
        %v529 = vpop.permute.xlu0 %528
        %v531 = vsel %vm417, %v527, 0
        %v534 = vsel %vm417, %v529, 0
        %536 = vmatprep.subr.bf16.mxu0 0
        %537 = vmatpush1.bf16.xpose.msra.mxu0 0
        %538 = vmatprep.subr.bf16.mxu0 0
        %539 = vmatpush1.bf16.xpose.msra.mxu0 0
        %540 = vmatprep.subr.bf16.mxu0 0
        %541 = vmatpush1.bf16.xpose.msra.mxu0 0
        %542 = vmatprep.subr.bf16.mxu0 0
        %543 = vmatpush1.bf16.xpose.msra.mxu0 0
        %544 = vmatprep.subr.bf16.mxu0 0
        %545 = vmatpush1.bf16.xpose.msra.mxu0 0
        %546 = vmatprep.subr.bf16.mxu0 0
        %547 = vmatpush1.bf16.xpose.msra.mxu0 0
        %548 = vmatprep.subr.bf16.mxu0 0
        %549 = vmatpush1.bf16.xpose.msra.mxu0 0
        %550 = vmatprep.subr.bf16.mxu0 0
        %551 = vmatpush1.bf16.xpose.msra.mxu0 %v534
        %552 = vmatprep.subr.bf16.mxu0 0
        %553 = vmatpush2.bf16.xpose.msra.mxu0 0
        %554 = vmatprep.subr.bf16.mxu0 0
        %555 = vmatpush2.bf16.xpose.msra.mxu0 0
        %556 = vmatprep.subr.bf16.mxu0 0
        %557 = vmatpush2.bf16.xpose.msra.mxu0 0
        %558 = vmatprep.subr.bf16.mxu0 0
        %559 = vmatpush2.bf16.xpose.msra.mxu0 0
        %560 = vmatprep.subr.bf16.mxu0 0
        %561 = vmatpush2.bf16.xpose.msra.mxu0 0
        %562 = vmatprep.subr.bf16.mxu0 0
        %563 = vmatpush2.bf16.xpose.msra.mxu0 0
        %564 = vmatprep.subr.bf16.mxu0 0
        %565 = vmatpush2.bf16.xpose.msra.mxu0 0
        %566 = vmatprep.subr.bf16.mxu0 0
        %567 = vmatpush2.bf16.xpose.msra.mxu0 0
        %568 = vmatprep.mubr.bf16.mxu0 0
        %569 = vmatmul.mubr.bf16.gmra.mxu0 %v531
        %v570 = vpop.f32.mrf.mxu0
        %v571 = vadd.f32 0.0, %v570
        %v572 = vpop.f32.mrf.mxu0
        %v573 = vpop.f32.mrf.mxu0
        %v574 = vpop.f32.mrf.mxu0
        %575 = vdwg.mxu0
        %v576 = vsel %vm417, %v571, -inf
        %577 = vmax.xlane.f32.xlu0 %v576
        %v578 = vpop.xlane.xlu0 %577
        %v579 = vsub.f32 %v571, %v578
        %v580 = vmul.f32 %v579, 1.442695
        %v581 = vpow.pop %v580
        %v582 = vsel %vm417, %v581, 0.0
        %583 = vadd.xlane.f32.xlu0 %v582
        %v584 = vpop.xlane.xlu0 %583
        %v585 = vrcp.pop %v584
        %v586 = vmul.f32 %v581, %v585
        %v587 = vpack.c.bf16 %v586, %v586
        %588 = vrot.lane.b32.xlu0 %v413, 56
        %v589 = vpop.permute.xlu0 %588
        %v591 = vsel %vm417, %v587, 0
        %v594 = vsel %vm481, %v589, 0
        %596 = vmatprep.subr.bf16.mxu0 0
        %597 = vmatpush1.bf16.msra.mxu0 0
        %598 = vmatprep.subr.bf16.mxu0 0
        %599 = vmatpush1.bf16.msra.mxu0 0
        %600 = vmatprep.subr.bf16.mxu0 0
        %601 = vmatpush1.bf16.msra.mxu0 0
        %602 = vmatprep.subr.bf16.mxu0 0
        %603 = vmatpush1.bf16.msra.mxu0 0
        %604 = vmatprep.subr.bf16.mxu0 0
        %605 = vmatpush1.bf16.msra.mxu0 0
        %606 = vmatprep.subr.bf16.mxu0 0
        %607 = vmatpush1.bf16.msra.mxu0 0
        %608 = vmatprep.subr.bf16.mxu0 0
        %609 = vmatpush1.bf16.msra.mxu0 0
        %610 = vmatprep.subr.bf16.mxu0 0
        %611 = vmatpush1.bf16.msra.mxu0 %v594
        %612 = vmatprep.subr.bf16.mxu0 0
        %613 = vmatpush2.bf16.msra.mxu0 0
        %614 = vmatprep.subr.bf16.mxu0 0
        %615 = vmatpush2.bf16.msra.mxu0 0
        %616 = vmatprep.subr.bf16.mxu0 0
        %617 = vmatpush2.bf16.msra.mxu0 0
        %618 = vmatprep.subr.bf16.mxu0 0
        %619 = vmatpush2.bf16.msra.mxu0 0
        %620 = vmatprep.subr.bf16.mxu0 0
        %621 = vmatpush2.bf16.msra.mxu0 0
        %622 = vmatprep.subr.bf16.mxu0 0
        %623 = vmatpush2.bf16.msra.mxu0 0
        %624 = vmatprep.subr.bf16.mxu0 0
        %625 = vmatpush2.bf16.msra.mxu0 0
        %626 = vmatprep.subr.bf16.mxu0 0
        %627 = vmatpush2.bf16.msra.mxu0 0
        %628 = vmatprep.mubr.bf16.mxu0 0
        %629 = vmatmul.mubr.bf16.gmra.mxu0 %v591
        %v630 = vpop.f32.mrf.mxu0
        %v631 = vadd.f32 0.0, %v630
        %v632 = vpop.f32.mrf.mxu0
        %v633 = vpop.f32.mrf.mxu0
        %v634 = vpop.f32.mrf.mxu0
        %635 = vdwg.mxu0
        %v636 = vpack.c.bf16 %v631, %v631
        %637 = vrot.lane.b32.xlu0 %v413, 112
        %v638 = vpop.permute.xlu0 %637
        %639 = vrot.lane.b32.xlu0 %v413, 80
        %v640 = vpop.permute.xlu0 %639
        %v642 = vsel %vm417, %v638, 0
        %v645 = vsel %vm417, %v640, 0
        %647 = vmatprep.subr.bf16.mxu0 0
        %648 = vmatpush1.bf16.xpose.msra.mxu0 0
        %649 = vmatprep.subr.bf16.mxu0 0
        %650 = vmatpush1.bf16.xpose.msra.mxu0 0
        %651 = vmatprep.subr.bf16.mxu0 0
        %652 = vmatpush1.bf16.xpose.msra.mxu0 0
        %653 = vmatprep.subr.bf16.mxu0 0
        %654 = vmatpush1.bf16.xpose.msra.mxu0 0
        %655 = vmatprep.subr.bf16.mxu0 0
        %656 = vmatpush1.bf16.xpose.msra.mxu0 0
        %657 = vmatprep.subr.bf16.mxu0 0
        %658 = vmatpush1.bf16.xpose.msra.mxu0 0
        %659 = vmatprep.subr.bf16.mxu0 0
        %660 = vmatpush1.bf16.xpose.msra.mxu0 0
        %661 = vmatprep.subr.bf16.mxu0 0
        %662 = vmatpush1.bf16.xpose.msra.mxu0 %v645
        %663 = vmatprep.subr.bf16.mxu0 0
        %664 = vmatpush2.bf16.xpose.msra.mxu0 0
        %665 = vmatprep.subr.bf16.mxu0 0
        %666 = vmatpush2.bf16.xpose.msra.mxu0 0
        %667 = vmatprep.subr.bf16.mxu0 0
        %668 = vmatpush2.bf16.xpose.msra.mxu0 0
        %669 = vmatprep.subr.bf16.mxu0 0
        %670 = vmatpush2.bf16.xpose.msra.mxu0 0
        %671 = vmatprep.subr.bf16.mxu0 0
        %672 = vmatpush2.bf16.xpose.msra.mxu0 0
        %673 = vmatprep.subr.bf16.mxu0 0
        %674 = vmatpush2.bf16.xpose.msra.mxu0 0
        %675 = vmatprep.subr.bf16.mxu0 0
        %676 = vmatpush2.bf16.xpose.msra.mxu0 0
        %677 = vmatprep.subr.bf16.mxu0 0
        %678 = vmatpush2.bf16.xpose.msra.mxu0 0
        %679 = vmatprep.mubr.bf16.mxu0 0
        %680 = vmatmul.mubr.bf16.gmra.mxu0 %v642
        %v681 = vpop.f32.mrf.mxu0
        %v682 = vadd.f32 0.0, %v681
        %v683 = vpop.f32.mrf.mxu0
        %v684 = vpop.f32.mrf.mxu0
        %v685 = vpop.f32.mrf.mxu0
        %686 = vdwg.mxu0
        %v687 = vsel %vm417, %v682, -inf
        %688 = vmax.xlane.f32.xlu0 %v687
        %v689 = vpop.xlane.xlu0 %688
        %v690 = vsub.f32 %v682, %v689
        %v691 = vmul.f32 %v690, 1.442695
        %v692 = vpow.pop %v691
        %v693 = vsel %vm417, %v692, 0.0
        %694 = vadd.xlane.f32.xlu0 %v693
        %v695 = vpop.xlane.xlu0 %694
        %v696 = vrcp.pop %v695
        %v697 = vmul.f32 %v692, %v696
        %v698 = vpack.c.bf16 %v697, %v697
        %699 = vrot.lane.b32.xlu0 %v413, 48
        %v700 = vpop.permute.xlu0 %699
        %v702 = vsel %vm417, %v698, 0
        %v705 = vsel %vm481, %v700, 0
        %707 = vmatprep.subr.bf16.mxu0 0
        %708 = vmatpush1.bf16.msra.mxu0 0
        %709 = vmatprep.subr.bf16.mxu0 0
        %710 = vmatpush1.bf16.msra.mxu0 0
        %711 = vmatprep.subr.bf16.mxu0 0
        %712 = vmatpush1.bf16.msra.mxu0 0
        %713 = vmatprep.subr.bf16.mxu0 0
        %714 = vmatpush1.bf16.msra.mxu0 0
        %715 = vmatprep.subr.bf16.mxu0 0
        %716 = vmatpush1.bf16.msra.mxu0 0
        %717 = vmatprep.subr.bf16.mxu0 0
        %718 = vmatpush1.bf16.msra.mxu0 0
        %719 = vmatprep.subr.bf16.mxu0 0
        %720 = vmatpush1.bf16.msra.mxu0 0
        %721 = vmatprep.subr.bf16.mxu0 0
        %722 = vmatpush1.bf16.msra.mxu0 %v705
        %723 = vmatprep.subr.bf16.mxu0 0
        %724 = vmatpush2.bf16.msra.mxu0 0
        %725 = vmatprep.subr.bf16.mxu0 0
        %726 = vmatpush2.bf16.msra.mxu0 0
        %727 = vmatprep.subr.bf16.mxu0 0
        %728 = vmatpush2.bf16.msra.mxu0 0
        %729 = vmatprep.subr.bf16.mxu0 0
        %730 = vmatpush2.bf16.msra.mxu0 0
        %731 = vmatprep.subr.bf16.mxu0 0
        %732 = vmatpush2.bf16.msra.mxu0 0
        %733 = vmatprep.subr.bf16.mxu0 0
        %734 = vmatpush2.bf16.msra.mxu0 0
        %735 = vmatprep.subr.bf16.mxu0 0
        %736 = vmatpush2.bf16.msra.mxu0 0
        %737 = vmatprep.subr.bf16.mxu0 0
        %738 = vmatpush2.bf16.msra.mxu0 0
        %739 = vmatprep.mubr.bf16.mxu0 0
        %740 = vmatmul.mubr.bf16.gmra.mxu0 %v702
        %v741 = vpop.f32.mrf.mxu0
        %v742 = vadd.f32 0.0, %v741
        %v743 = vpop.f32.mrf.mxu0
        %v744 = vpop.f32.mrf.mxu0
        %v745 = vpop.f32.mrf.mxu0
        %746 = vdwg.mxu0
        %v747 = vpack.c.bf16 %v742, %v742
        %748 = vrot.lane.b32.xlu0 %v413, 104
        %v749 = vpop.permute.xlu0 %748
        %750 = vrot.lane.b32.xlu0 %v413, 72
        %v751 = vpop.permute.xlu0 %750
        %v753 = vsel %vm417, %v749, 0
        %v756 = vsel %vm417, %v751, 0
        %758 = vmatprep.subr.bf16.mxu0 0
        %759 = vmatpush1.bf16.xpose.msra.mxu0 0
        %760 = vmatprep.subr.bf16.mxu0 0
        %761 = vmatpush1.bf16.xpose.msra.mxu0 0
        %762 = vmatprep.subr.bf16.mxu0 0
        %763 = vmatpush1.bf16.xpose.msra.mxu0 0
        %764 = vmatprep.subr.bf16.mxu0 0
        %765 = vmatpush1.bf16.xpose.msra.mxu0 0
        %766 = vmatprep.subr.bf16.mxu0 0
        %767 = vmatpush1.bf16.xpose.msra.mxu0 0
        %768 = vmatprep.subr.bf16.mxu0 0
        %769 = vmatpush1.bf16.xpose.msra.mxu0 0
        %770 = vmatprep.subr.bf16.mxu0 0
        %771 = vmatpush1.bf16.xpose.msra.mxu0 0
        %772 = vmatprep.subr.bf16.mxu0 0
        %773 = vmatpush1.bf16.xpose.msra.mxu0 %v756
        %774 = vmatprep.subr.bf16.mxu0 0
        %775 = vmatpush2.bf16.xpose.msra.mxu0 0
        %776 = vmatprep.subr.bf16.mxu0 0
        %777 = vmatpush2.bf16.xpose.msra.mxu0 0
        %778 = vmatprep.subr.bf16.mxu0 0
        %779 = vmatpush2.bf16.xpose.msra.mxu0 0
        %780 = vmatprep.subr.bf16.mxu0 0
        %781 = vmatpush2.bf16.xpose.msra.mxu0 0
        %782 = vmatprep.subr.bf16.mxu0 0
        %783 = vmatpush2.bf16.xpose.msra.mxu0 0
        %784 = vmatprep.subr.bf16.mxu0 0
        %785 = vmatpush2.bf16.xpose.msra.mxu0 0
        %786 = vmatprep.subr.bf16.mxu0 0
        %787 = vmatpush2.bf16.xpose.msra.mxu0 0
        %788 = vmatprep.subr.bf16.mxu0 0
        %789 = vmatpush2.bf16.xpose.msra.mxu0 0
        %790 = vmatprep.mubr.bf16.mxu0 0
        %791 = vmatmul.mubr.bf16.gmra.mxu0 %v753
        %v792 = vpop.f32.mrf.mxu0
        %v793 = vadd.f32 0.0, %v792
        %v794 = vpop.f32.mrf.mxu0
        %v795 = vpop.f32.mrf.mxu0
        %v796 = vpop.f32.mrf.mxu0
        %797 = vdwg.mxu0
        %v798 = vsel %vm417, %v793, -inf
        %799 = vmax.xlane.f32.xlu0 %v798
        %v800 = vpop.xlane.xlu0 %799
        %v801 = vsub.f32 %v793, %v800
        %v802 = vmul.f32 %v801, 1.442695
        %v803 = vpow.pop %v802
        %v804 = vsel %vm417, %v803, 0.0
        %805 = vadd.xlane.f32.xlu0 %v804
        %v806 = vpop.xlane.xlu0 %805
        %v807 = vrcp.pop %v806
        %v808 = vmul.f32 %v803, %v807
        %v809 = vpack.c.bf16 %v808, %v808
        %810 = vrot.lane.b32.xlu0 %v413, 40
        %v811 = vpop.permute.xlu0 %810
        %v813 = vsel %vm417, %v809, 0
        %v816 = vsel %vm481, %v811, 0
        %818 = vmatprep.subr.bf16.mxu0 0
        %819 = vmatpush1.bf16.msra.mxu0 0
        %820 = vmatprep.subr.bf16.mxu0 0
        %821 = vmatpush1.bf16.msra.mxu0 0
        %822 = vmatprep.subr.bf16.mxu0 0
        %823 = vmatpush1.bf16.msra.mxu0 0
        %824 = vmatprep.subr.bf16.mxu0 0
        %825 = vmatpush1.bf16.msra.mxu0 0
        %826 = vmatprep.subr.bf16.mxu0 0
        %827 = vmatpush1.bf16.msra.mxu0 0
        %828 = vmatprep.subr.bf16.mxu0 0
        %829 = vmatpush1.bf16.msra.mxu0 0
        %830 = vmatprep.subr.bf16.mxu0 0
        %831 = vmatpush1.bf16.msra.mxu0 0
        %832 = vmatprep.subr.bf16.mxu0 0
        %833 = vmatpush1.bf16.msra.mxu0 %v816
        %834 = vmatprep.subr.bf16.mxu0 0
        %835 = vmatpush2.bf16.msra.mxu0 0
        %836 = vmatprep.subr.bf16.mxu0 0
        %837 = vmatpush2.bf16.msra.mxu0 0
        %838 = vmatprep.subr.bf16.mxu0 0
        %839 = vmatpush2.bf16.msra.mxu0 0
        %840 = vmatprep.subr.bf16.mxu0 0
        %841 = vmatpush2.bf16.msra.mxu0 0
        %842 = vmatprep.subr.bf16.mxu0 0
        %843 = vmatpush2.bf16.msra.mxu0 0
        %844 = vmatprep.subr.bf16.mxu0 0
        %845 = vmatpush2.bf16.msra.mxu0 0
        %846 = vmatprep.subr.bf16.mxu0 0
        %847 = vmatpush2.bf16.msra.mxu0 0
        %848 = vmatprep.subr.bf16.mxu0 0
        %849 = vmatpush2.bf16.msra.mxu0 0
        %850 = vmatprep.mubr.bf16.mxu0 0
        %851 = vmatmul.mubr.bf16.gmra.mxu0 %v813
        %v852 = vpop.f32.mrf.mxu0
        %v853 = vadd.f32 0.0, %v852
        %v854 = vpop.f32.mrf.mxu0
        %v855 = vpop.f32.mrf.mxu0
        %v856 = vpop.f32.mrf.mxu0
        %857 = vdwg.mxu0
        %v858 = vpack.c.bf16 %v853, %v853
        %860 = vrot.lane.b32.xlu0 %v636, 8
        %v861 = vpop.permute.xlu0 %860
        %863 = vrot.lane.b32.xlu0 %v747, 16
        %v864 = vpop.permute.xlu0 %863
        %866 = vrot.lane.b32.xlu0 %v858, 24
        %v867 = vpop.permute.xlu0 %866
        %v870 = vsel %vm417, %v525, %v861
        %vm871 = vcmask 130048
        %v873 = vsel %vm871, %v870, %v864
        %vm874 = vcmask 195584
        %v876 = vsel %vm874, %v873, %v867
        %v877 = vld [vmem:[%s3] sm:$0xf]
        %v878 = vld [vmem:[%s3 + $0x4] sm:$0xf]
        %v879 = vld [vmem:[%s3 + $0x8] sm:$0xf]
        %v880 = vld [vmem:[%s3 + $0xc] sm:$0xf]
        %v881 = vld [vmem:[%s4] sm:$0x1]
        %v883 = vlaneseq
        %v884 = vshrl.u32 %v883, 7
        %v885 = vsub.s32 0, %v884
        %v886 = vrot.slane %v881, %v885
        %v892 = vunpack.c.l.b16 %v877
        %v893 = vunpack.c.l.b16 %v878
        %v894 = vunpack.c.l.b16 %v879
        %v895 = vunpack.c.l.b16 %v880
        %v896 = vpack.c.b16 %v893, %v892
        %v897 = vpack.c.b16 %v895, %v894
        %v900 = vsel %vm369, %v876, 0
        %902 = vmatprep.subr.bf16.mxu0 0
        %903 = vmatpush1.bf16.msra.mxu0 0
        %904 = vmatprep.subr.bf16.mxu0 0
        %905 = vmatpush1.bf16.msra.mxu0 0
        %906 = vmatprep.subr.bf16.mxu0 0
        %907 = vmatpush1.bf16.msra.mxu0 0
        %908 = vmatprep.subr.bf16.mxu0 0
        %909 = vmatpush1.bf16.msra.mxu0 0
        %910 = vmatprep.subr.bf16.mxu0 0
        %911 = vmatpush1.bf16.msra.mxu0 0
        %912 = vmatprep.subr.bf16.mxu0 0
        %913 = vmatpush1.bf16.msra.mxu0 0
        %914 = vmatprep.subr.bf16.mxu0 0
        %915 = vmatpush1.bf16.msra.mxu0 %v897
        %916 = vmatprep.subr.bf16.mxu0 0
        %917 = vmatpush1.bf16.msra.mxu0 %v896
        %918 = vmatprep.subr.bf16.mxu0 0
        %919 = vmatpush2.bf16.msra.mxu0 0
        %920 = vmatprep.subr.bf16.mxu0 0
        %921 = vmatpush2.bf16.msra.mxu0 0
        %922 = vmatprep.subr.bf16.mxu0 0
        %923 = vmatpush2.bf16.msra.mxu0 0
        %924 = vmatprep.subr.bf16.mxu0 0
        %925 = vmatpush2.bf16.msra.mxu0 0
        %926 = vmatprep.subr.bf16.mxu0 0
        %927 = vmatpush2.bf16.msra.mxu0 0
        %928 = vmatprep.subr.bf16.mxu0 0
        %929 = vmatpush2.bf16.msra.mxu0 0
        %930 = vmatprep.subr.bf16.mxu0 0
        %931 = vmatpush2.bf16.msra.mxu0 0
        %932 = vmatprep.subr.bf16.mxu0 0
        %933 = vmatpush2.bf16.msra.mxu0 0
        %934 = vmatprep.mubr.bf16.mxu0 0
        %935 = vmatmul.mubr.bf16.gmra.mxu0 %v900
        %v936 = vpop.f32.mrf.mxu0
        %v937 = vadd.f32 %v886, %v936
        %v938 = vpop.f32.mrf.mxu0
        %v939 = vpop.f32.mrf.mxu0
        %v940 = vpop.f32.mrf.mxu0
        %941 = vdwg.mxu0
        %v942 = vadd.f32 %v344, %v937
        %v943 = vpack.c.bf16 %v942, %v942
        %v944 = vld [vmem:[#allocation2] sm:$0xf]
        %v945 = vld [vmem:[#allocation2 + $0x4] sm:$0xf]
        %v946 = vld [vmem:[#allocation2 + $0x8] sm:$0xf]
        %v947 = vld [vmem:[#allocation2 + $0xc] sm:$0xf]
        %v948 = vld [vmem:[%s6] sm:$0x1]
        %v950 = vlaneseq
        %v951 = vshrl.u32 %v950, 7
        %v952 = vsub.s32 0, %v951
        %v953 = vrot.slane %v948, %v952
        %v959 = vunpack.c.l.b16 %v944
        %v960 = vunpack.c.l.b16 %v945
        %v961 = vunpack.c.l.b16 %v946
        %v962 = vunpack.c.l.b16 %v947
        %v963 = vpack.c.b16 %v960, %v959
        %v964 = vpack.c.b16 %v962, %v961
        %v968 = vsel %vm369, %v943, 0
        %970 = vmatprep.subr.bf16.mxu0 0
        %971 = vmatpush1.bf16.msra.mxu0 0
        %972 = vmatprep.subr.bf16.mxu0 0
        %973 = vmatpush1.bf16.msra.mxu0 0
        %974 = vmatprep.subr.bf16.mxu0 0
        %975 = vmatpush1.bf16.msra.mxu0 0
        %976 = vmatprep.subr.bf16.mxu0 0
        %977 = vmatpush1.bf16.msra.mxu0 0
        %978 = vmatprep.subr.bf16.mxu0 0
        %979 = vmatpush1.bf16.msra.mxu0 0
        %980 = vmatprep.subr.bf16.mxu0 0
        %981 = vmatpush1.bf16.msra.mxu0 0
        %982 = vmatprep.subr.bf16.mxu0 0
        %983 = vmatpush1.bf16.msra.mxu0 %v964
        %984 = vmatprep.subr.bf16.mxu0 0
        %985 = vmatpush1.bf16.msra.mxu0 %v963
        %986 = vmatprep.subr.bf16.mxu0 0
        %987 = vmatpush2.bf16.msra.mxu0 0
        %988 = vmatprep.subr.bf16.mxu0 0
        %989 = vmatpush2.bf16.msra.mxu0 0
        %990 = vmatprep.subr.bf16.mxu0 0
        %991 = vmatpush2.bf16.msra.mxu0 0
        %992 = vmatprep.subr.bf16.mxu0 0
        %993 = vmatpush2.bf16.msra.mxu0 0
        %994 = vmatprep.subr.bf16.mxu0 0
        %995 = vmatpush2.bf16.msra.mxu0 0
        %996 = vmatprep.subr.bf16.mxu0 0
        %997 = vmatpush2.bf16.msra.mxu0 0
        %998 = vmatprep.subr.bf16.mxu0 0
        %999 = vmatpush2.bf16.msra.mxu0 0
        %1000 = vmatprep.subr.bf16.mxu0 0
        %1001 = vmatpush2.bf16.msra.mxu0 0
        %1002 = vmatprep.mubr.bf16.mxu0 0
        %1003 = vmatmul.mubr.bf16.gmra.mxu0 %v968
        %v1004 = vpop.f32.mrf.mxu0
        %v1005 = vadd.f32 %v953, %v1004
        %v1006 = vpop.f32.mrf.mxu0
        %v1007 = vpop.f32.mrf.mxu0
        %v1008 = vpop.f32.mrf.mxu0
        %1009 = vdwg.mxu0
        %v1010 = vmax.f32 %v1005, 0.0
        %v1011 = vpack.c.bf16 %v1010, %v1010
        %v1012 = vld [vmem:[%s7] sm:$0xf]
        %v1013 = vld [vmem:[%s7 + $0x4] sm:$0xf]
        %v1014 = vld [vmem:[%s7 + $0x8] sm:$0xf]
        %v1015 = vld [vmem:[%s7 + $0xc] sm:$0xf]
        %v1016 = vld [vmem:[%s7 + $0x10] sm:$0xf]
        %v1017 = vld [vmem:[%s7 + $0x14] sm:$0xf]
        %v1018 = vld [vmem:[%s7 + $0x18] sm:$0xf]
        %v1019 = vld [vmem:[%s7 + $0x1c] sm:$0xf]
        %v1020 = vld [vmem:[%s8] sm:$0x1]
        %v1022 = vlaneseq
        %v1023 = vshrl.u32 %v1022, 7
        %v1024 = vsub.s32 0, %v1023
        %v1025 = vrot.slane %v1020, %v1024
        %v1035 = vunpack.c.l.b16 %v1012
        %v1036 = vunpack.c.l.b16 %v1013
        %v1037 = vunpack.c.l.b16 %v1014
        %v1038 = vunpack.c.l.b16 %v1015
        %v1039 = vunpack.c.l.b16 %v1016
        %v1040 = vunpack.c.l.b16 %v1017
        %v1041 = vunpack.c.l.b16 %v1018
        %v1042 = vunpack.c.l.b16 %v1019
        %v1043 = vpack.c.b16 %v1036, %v1035
        %v1044 = vpack.c.b16 %v1038, %v1037
        %v1045 = vpack.c.b16 %v1040, %v1039
        %v1046 = vpack.c.b16 %v1042, %v1041
        %vm1051 = vcmask 523264
        %v1053 = vsel %vm1051, %v1011, 0
        %1055 = vmatprep.subr.bf16.mxu0 0
        %1056 = vmatpush1.bf16.msra.mxu0 0
        %1057 = vmatprep.subr.bf16.mxu0 0
        %1058 = vmatpush1.bf16.msra.mxu0 0
        %1059 = vmatprep.subr.bf16.mxu0 0
        %1060 = vmatpush1.bf16.msra.mxu0 0
        %1061 = vmatprep.subr.bf16.mxu0 0
        %1062 = vmatpush1.bf16.msra.mxu0 0
        %1063 = vmatprep.subr.bf16.mxu0 0
        %1064 = vmatpush1.bf16.msra.mxu0 %v1046
        %1065 = vmatprep.subr.bf16.mxu0 0
        %1066 = vmatpush1.bf16.msra.mxu0 %v1045
        %1067 = vmatprep.subr.bf16.mxu0 0
        %1068 = vmatpush1.bf16.msra.mxu0 %v1044
        %1069 = vmatprep.subr.bf16.mxu0 0
        %1070 = vmatpush1.bf16.msra.mxu0 %v1043
        %1071 = vmatprep.subr.bf16.mxu0 0
        %1072 = vmatpush2.bf16.msra.mxu0 0
        %1073 = vmatprep.subr.bf16.mxu0 0
        %1074 = vmatpush2.bf16.msra.mxu0 0
        %1075 = vmatprep.subr.bf16.mxu0 0
        %1076 = vmatpush2.bf16.msra.mxu0 0
        %1077 = vmatprep.subr.bf16.mxu0 0
        %1078 = vmatpush2.bf16.msra.mxu0 0
        %1079 = vmatprep.subr.bf16.mxu0 0
        %1080 = vmatpush2.bf16.msra.mxu0 0
        %1081 = vmatprep.subr.bf16.mxu0 0
        %1082 = vmatpush2.bf16.msra.mxu0 0
        %1083 = vmatprep.subr.bf16.mxu0 0
        %1084 = vmatpush2.bf16.msra.mxu0 0
        %1085 = vmatprep.subr.bf16.mxu0 0
        %1086 = vmatpush2.bf16.msra.mxu0 0
        %1087 = vmatprep.mubr.bf16.mxu0 0
        %1088 = vmatmul.mubr.bf16.gmra.mxu0 %v1053
        %v1089 = vpop.f32.mrf.mxu0
        %v1090 = vadd.f32 %v1025, %v1089
        %v1091 = vpop.f32.mrf.mxu0
        %v1092 = vpop.f32.mrf.mxu0
        %v1093 = vpop.f32.mrf.mxu0
        %1094 = vdwg.mxu0
        %v1095 = vadd.f32 %v942, %v1090
        %1096 = vst.msk [vmem:[%s338] sm:$0xff] %vm369, %v1095
        %s1097 = sand.u32 %s226, 1
        %s1098 = scalar_lea.sflag [#allocation4], %s1097
        %s1099 = sand.u32 %s226, 1
        %s1100 = smul.addr %s1099, 8
        %s1101 = scalar_lea.vmem [#allocation5], %s1100
        // Predicated region
        $region61: #{tpu_custom_call.1} parent=55 // pred_check
          %p1102 = pneg %p236
        $region62: #{tpu_custom_call.1} parent=55 // pred_check_branch
          %1104 = sbr.rel (%p1102) target = $region64
        $region63: #{tpu_custom_call.1} parent=55 // pred_region
          %s1106 = ssub.s32 128, 128
          %1107 = vsyncadd %s1098, %s1106
          %s1108 = smul.addr %s24, 128
          %s1109 = scalar_lea.hbm %s9, %s1108
          %s1111 = sshll.u32 %s1101, 4
          %s1112 = int_to_ptr.vmem [resolvable:$true] %s1111
          %1114 = dma.vmem_to_hbm [thread:$0]  %s1112, 128, %s1109, %s1098
        $region64: #{tpu_custom_call.1} parent=55 // pred_fallthru
          _
      $region56: #{tpu_custom_call.1} parent=5 // pred_fallthru
        _
      %p1115 = scmp.le.s32.totalorder 2, %s19
      // Predicated region
      $region65: #{tpu_custom_call.1} parent=5 // pred_check
        %p1116 = pneg %p1115
      $region66: #{tpu_custom_call.1} parent=5 // pred_check_branch
        %1118 = sbr.rel (%p1116) target = $region68
      $region67: #{tpu_custom_call.1} parent=5 // pred_region
        %s1119 = ssub.s32 %s19, 2
        // Predicated region
        $region69: #{tpu_custom_call.1} parent=67 // pred_check
          %p1120 = pneg %p242
        $region70: #{tpu_custom_call.1} parent=67 // pred_check_branch
          %1122 = sbr.rel (%p1120) target = $region72
        $region71: #{tpu_custom_call.1} parent=67 // pred_region
          %s1123 = sand.u32 %s227, 1
          %s1124 = scalar_lea.sflag [#allocation4], %s1123
          %s1125 = sand.u32 %s227, 1
          %s1126 = smul.addr %s1125, 8
          %s1127 = scalar_lea.vmem [#allocation5], %s1126
          %1128 = dma.done %s1124, 128
        $region72: #{tpu_custom_call.1} parent=67 // pred_fallthru
          _
      $region68: #{tpu_custom_call.1} parent=5 // pred_fallthru
        _
    $region6: #{tpu_custom_call.1} parent=1 // loop_footer
      %s23 = sadd.s32 1, %s19
    $region7: #{tpu_custom_call.1} parent=1 // loop_footer_branch
      %18 = sbr.rel target = $region3
    $region8: #{tpu_custom_call.1} parent=1 // loop_exit
      _
    %1129 = vsyncpa [#allocation3], 1
    %s1130 = scalar_lea.sflag [#allocation3], 1
    %1131 = vsyncpa %s1130, 1
    %1132 = vsyncpa [#allocation4], 1
    %s1133 = scalar_lea.sflag [#allocation4], 1
    %1134 = vsyncpa %s1133, 1

</llo_original>
